<compile_context>
chip_gen: v5e
topology: v5e:2x2
jax: 0.10.0
libtpu: 0.0.40
codegen_flags: <defaults>
</compile_context>

<pallas_src>
import math
import functools

import jax
import jax.numpy as jnp
from jax.experimental import pallas as pl
from jax.experimental.pallas import tpu as pltpu

EPS = 1e-5  # nn.LayerNorm default eps (AdaLayerNorm inner LN and norm3)

# Base GEMM tile targets (sized to fit v7x's 64 MiB VMEM with double buffering).
_TM, _TN, _TK = 256, 256, 512


# ----------------------------------------------------------------------------
# helpers
# ----------------------------------------------------------------------------
def _mxu_supports_int8():
    """int8 x int8 -> int32 MXU path: v5e/v6e.  Fall back to bf16 elsewhere."""
    try:
        kind = jax.devices()[0].device_kind.lower()
    except Exception:
        return False
    return any(t in kind for t in ("v5", "v6"))


def _pick_tile(dim, target, align):
    """Largest tile <= target that divides dim and is a multiple of align
    (falls back to the full dim when nothing divides)."""
    if dim <= target:
        return dim
    t = (target // align) * align
    while t >= align:
        if dim % t == 0:
            return t
        t -= align
    return dim


def _row_quant(y):
    """Per-token symmetric int8 dynamic quantization (awq invoke_quant)."""
    absmax = jnp.maximum(jnp.max(jnp.abs(y), axis=-1, keepdims=True), 1e-6)
    q = jnp.clip(jnp.round(y * (127.0 / absmax)), -127.0, 127.0).astype(jnp.int8)
    return q, absmax * (1.0 / 127.0)


def _matmul_step(qx_ref, w_ref, acc_ref, k_axis, int8_mxu):
    """One K-tile of the W8A8 matmul, accumulated into VMEM scratch."""
    @pl.when(pl.program_id(k_axis) == 0)
    def _():
        acc_ref[...] = jnp.zeros_like(acc_ref)

    if int8_mxu:
        lhs, rhs = qx_ref[...], w_ref[...]                    # int8 x int8 -> int32
    else:
        lhs = qx_ref[...].astype(jnp.bfloat16)                # bf16 MXU path (v7x)
        rhs = w_ref[...].astype(jnp.bfloat16)
    acc_ref[...] += jax.lax.dot_general(
        lhs, rhs, (((1,), (0,)), ((), ())), preferred_element_type=acc_ref.dtype)


def _dequant(acc_ref, xs_ref, ws_ref, b_ref):
    """W8A8OF16LinearDynamicInputScale epilogue: acc * act_scale * w_scale + b."""
    return acc_ref[...].astype(jnp.float32) * xs_ref[...] * ws_ref[...] + b_ref[...]


# ----------------------------------------------------------------------------
# Pallas kernels
# ----------------------------------------------------------------------------
def _adanorm_quant_kernel(x_ref, scale_ref, shift_ref, qx_ref, qs_ref):
    """AdaLayerNorm (no-affine LN, then *(1+scale)+shift) fused with int8 quant."""
    x = x_ref[...].astype(jnp.float32)
    mean = jnp.mean(x, axis=-1, keepdims=True)
    var = jnp.mean(jnp.square(x - mean), axis=-1, keepdims=True)
    y = (x - mean) * jax.lax.rsqrt(var + EPS)
    y = y * (1.0 + scale_ref[...]) + shift_ref[...]
    q, s = _row_quant(y)
    qx_ref[...] = q
    qs_ref[...] = s


def _gemm_kernel(qx_ref, xs_ref, w_ref, ws_ref, b_ref, o_ref, acc_ref, *, int8_mxu):
    _matmul_step(qx_ref, w_ref, acc_ref, 2, int8_mxu)

    @pl.when(pl.program_id(2) == pl.num_programs(2) - 1)
    def _():
        o_ref[...] = _dequant(acc_ref, xs_ref, ws_ref, b_ref).astype(o_ref.dtype)


def _gemm_res_kernel(qx_ref, xs_ref, w_ref, ws_ref, b_ref, res_ref, o_ref, acc_ref,
                     *, int8_mxu):
    _matmul_step(qx_ref, w_ref, acc_ref, 2, int8_mxu)

    @pl.when(pl.program_id(2) == pl.num_programs(2) - 1)
    def _():
        y = _dequant(acc_ref, xs_ref, ws_ref, b_ref) + res_ref[...].astype(jnp.float32)
        o_ref[...] = y.astype(o_ref.dtype)


def _gemm_quant_kernel(qx_ref, xs_ref, w_ref, ws_ref, b_ref, qo_ref, qs_ref, acc_ref,
                       *, int8_mxu, gelu):
    """GEMM with fused (GELU +) per-token int8 quant epilogue (tn == M)."""
    _matmul_step(qx_ref, w_ref, acc_ref, 1, int8_mxu)

    @pl.when(pl.program_id(1) == pl.num_programs(1) - 1)
    def _():
        y = _dequant(acc_ref, xs_ref, ws_ref, b_ref)
        if gelu:
            # TODO(synk): AWQ gelu_and_quant uses exact erf-GELU; tanh approx used here.
            y = jax.nn.gelu(y, approximate=True)
        q, s = _row_quant(y)
        qo_ref[...] = q
        qs_ref[...] = s


def _gemm_res_ln_quant_kernel(qx_ref, xs_ref, w_ref, ws_ref, b_ref, res_ref,
                              g_ref, beta_ref, h_ref, qo_ref, qs_ref, acc_ref,
                              *, int8_mxu):
    """out_proj GEMM fused with residual add, LayerNorm3 and int8 quant (tn == M)."""
    _matmul_step(qx_ref, w_ref, acc_ref, 1, int8_mxu)

    @pl.when(pl.program_id(1) == pl.num_programs(1) - 1)
    def _():
        h = _dequant(acc_ref, xs_ref, ws_ref, b_ref) + res_ref[...].astype(jnp.float32)
        h_ref[...] = h.astype(h_ref.dtype)
        mean = jnp.mean(h, axis=-1, keepdims=True)
        var = jnp.mean(jnp.square(h - mean), axis=-1, keepdims=True)
        y = (h - mean) * jax.lax.rsqrt(var + EPS)
        y = y * g_ref[...] + beta_ref[...]
        q, s = _row_quant(y)
        qo_ref[...] = q
        qs_ref[...] = s


def _flash_attn_quant_kernel(q_ref, k_ref, v_ref, qo_ref, qs_ref,
                             m_ref, l_ref, acc_ref,
                             *, num_heads, head_dim, scale):
    """Online-softmax flash attention over KV tiles, all heads of one q-tile,
       with the attention-output per-token int8 quant fused into the epilogue."""
    ki = pl.program_id(2)

    @pl.when(ki == 0)
    def _():
        m_ref[...] = jnp.full(m_ref.shape, -jnp.inf, dtype=m_ref.dtype)
        l_ref[...] = jnp.zeros_like(l_ref)
        acc_ref[...] = jnp.zeros_like(acc_ref)

    q = q_ref[0]                                   # (tq, dim) bf16
    k = k_ref[0]                                   # (tk, dim) bf16
    v = v_ref[0]                                   # (tk, dim) bf16
    for h in range(num_heads):
        cols = slice(h * head_dim, (h + 1) * head_dim)
        s = jax.lax.dot_general(q[:, cols], k[:, cols], (((1,), (1,)), ((), ())),
                                preferred_element_type=jnp.float32) * scale
        m_prev = m_ref[:, h:h + 1]
        m_new = jnp.maximum(m_prev, jnp.max(s, axis=-1, keepdims=True))
        alpha = jnp.exp(m_prev - m_new)
        p = jnp.exp(s - m_new)
        l_ref[:, h:h + 1] = alpha * l_ref[:, h:h + 1] + jnp.sum(p, axis=-1, keepdims=True)
        acc_ref[:, cols] = alpha * acc_ref[:, cols] + jax.lax.dot_general(
            p.astype(v.dtype), v[:, cols], (((1,), (0,)), ((), ())),
            preferred_element_type=jnp.float32)
        m_ref[:, h:h + 1] = m_new

    @pl.when(ki == pl.num_programs(2) - 1)
    def _():
        inv_l = pl.reciprocal(l_ref[...], approx=True)          # (tq, H)
        for h in range(num_heads):
            cols = slice(h * head_dim, (h + 1) * head_dim)
            acc_ref[:, cols] = acc_ref[:, cols] * inv_l[:, h:h + 1]
        qv, sv = _row_quant(acc_ref[...])                        # quant over full row
        qo_ref[0] = qv
        qs_ref[0] = sv


# ----------------------------------------------------------------------------
# wrappers (pallas_call plumbing)
# ----------------------------------------------------------------------------
def adanorm_quant(x, ada_scale, ada_shift):
    n, d = x.shape
    tm = _pick_tile(n, 512, 8)
    return pl.pallas_call(
        _adanorm_quant_kernel,
        out_shape=(jax.ShapeDtypeStruct((n, d), jnp.int8),
                   jax.ShapeDtypeStruct((n, 1), jnp.float32)),
        grid=(n // tm,),
        in_specs=[pl.BlockSpec((tm, d), lambda i: (i, 0)),
                  pl.BlockSpec((1, d), lambda i: (0, 0)),
                  pl.BlockSpec((1, d), lambda i: (0, 0))],
        out_specs=(pl.BlockSpec((tm, d), lambda i: (i, 0)),
                   pl.BlockSpec((tm, 1), lambda i: (i, 0))),
        compiler_params=pltpu.CompilerParams(dimension_semantics=("parallel",)),
    )(x, ada_scale, ada_shift)


def w8a8_gemm(qx, xs, w_t, ws, b, *, out_dtype=jnp.bfloat16, residual=None, int8_mxu=True):
    """qx:(N,K) int8, xs:(N,1) f32, w_t:(K,M) int8 (pre-transposed), ws/b:(1,M)."""
    n, kdim = qx.shape
    m = w_t.shape[1]
    tm = _pick_tile(n, _TM, 8)
    tn = _pick_tile(m, _TN, 128)
    tk = _pick_tile(kdim, _TK, 128)
    grid = (n // tm, m // tn, kdim // tk)
    acc_dtype = jnp.int32 if int8_mxu else jnp.float32
    in_specs = [
        pl.BlockSpec((tm, tk), lambda i, j, k: (i, k)),
        pl.BlockSpec((tm, 1), lambda i, j, k: (i, 0)),
        pl.BlockSpec((tk, tn), lambda i, j, k: (k, j)),
        pl.BlockSpec((1, tn), lambda i, j, k: (0, j)),
        pl.BlockSpec((1, tn), lambda i, j, k: (0, j)),
    ]
    args = [qx, xs, w_t, ws, b]
    if residual is None:
        kernel = functools.partial(_gemm_kernel, int8_mxu=int8_mxu)
    else:
        in_specs.append(pl.BlockSpec((tm, tn), lambda i, j, k: (i, j)))
        args.append(residual)
        kernel = functools.partial(_gemm_res_kernel, int8_mxu=int8_mxu)
    return pl.pallas_call(
        kernel,
        out_shape=jax.ShapeDtypeStruct((n, m), out_dtype),
        grid=grid,
        in_specs=in_specs,
        out_specs=pl.BlockSpec((tm, tn), lambda i, j, k: (i, j)),
        scratch_shapes=[pltpu.VMEM((tm, tn), acc_dtype)],
        compiler_params=pltpu.CompilerParams(
            dimension_semantics=("parallel", "parallel", "arbitrary")),
    )(*args)


def w8a8_gemm_quant(qx, xs, w_t, ws, b, *, gelu, int8_mxu):
    """GEMM with fused (GELU+)dynamic-quant epilogue.  Needs full rows -> tn == M."""
    n, kdim = qx.shape
    m = w_t.shape[1]
    tm = _pick_tile(n, _TM, 8)
    tk = _pick_tile(kdim, _TK, 128)
    acc_dtype = jnp.int32 if int8_mxu else jnp.float32
    kernel = functools.partial(_gemm_quant_kernel, int8_mxu=int8_mxu, gelu=gelu)
    return pl.pallas_call(
        kernel,
        out_shape=(jax.ShapeDtypeStruct((n, m), jnp.int8),
                   jax.ShapeDtypeStruct((n, 1), jnp.float32)),
        grid=(n // tm, kdim // tk),
        in_specs=[
            pl.BlockSpec((tm, tk), lambda i, k: (i, k)),
            pl.BlockSpec((tm, 1), lambda i, k: (i, 0)),
            pl.BlockSpec((tk, m), lambda i, k: (k, 0)),
            pl.BlockSpec((1, m), lambda i, k: (0, 0)),
            pl.BlockSpec((1, m), lambda i, k: (0, 0)),
        ],
        out_specs=(pl.BlockSpec((tm, m), lambda i, k: (i, 0)),
                   pl.BlockSpec((tm, 1), lambda i, k: (i, 0))),
        scratch_shapes=[pltpu.VMEM((tm, m), acc_dtype)],
        compiler_params=pltpu.CompilerParams(
            dimension_semantics=("parallel", "arbitrary")),
    )(qx, xs, w_t, ws, b)


def w8a8_gemm_res_ln_quant(qx, xs, w_t, ws, b, residual, ln_g, ln_b, *, int8_mxu):
    """out_proj GEMM + residual + LayerNorm3 + quant, all fused (tn == M == dim)."""
    n, kdim = qx.shape
    m = w_t.shape[1]
    tm = _pick_tile(n, _TM, 8)
    tk = _pick_tile(kdim, _TK, 128)
    acc_dtype = jnp.int32 if int8_mxu else jnp.float32
    kernel = functools.partial(_gemm_res_ln_quant_kernel, int8_mxu=int8_mxu)
    return pl.pallas_call(
        kernel,
        out_shape=(jax.ShapeDtypeStruct((n, m), jnp.bfloat16),   # hidden1 (residual2)
                   jax.ShapeDtypeStruct((n, m), jnp.int8),
                   jax.ShapeDtypeStruct((n, 1), jnp.float32)),
        grid=(n // tm, kdim // tk),
        in_specs=[
            pl.BlockSpec((tm, tk), lambda i, k: (i, k)),
            pl.BlockSpec((tm, 1), lambda i, k: (i, 0)),
            pl.BlockSpec((tk, m), lambda i, k: (k, 0)),
            pl.BlockSpec((1, m), lambda i, k: (0, 0)),
            pl.BlockSpec((1, m), lambda i, k: (0, 0)),
            pl.BlockSpec((tm, m), lambda i, k: (i, 0)),
            pl.BlockSpec((1, m), lambda i, k: (0, 0)),
            pl.BlockSpec((1, m), lambda i, k: (0, 0)),
        ],
        out_specs=(pl.BlockSpec((tm, m), lambda i, k: (i, 0)),
                   pl.BlockSpec((tm, m), lambda i, k: (i, 0)),
                   pl.BlockSpec((tm, 1), lambda i, k: (i, 0))),
        scratch_shapes=[pltpu.VMEM((tm, m), acc_dtype)],
        compiler_params=pltpu.CompilerParams(
            dimension_semantics=("parallel", "arbitrary")),
    )(qx, xs, w_t, ws, b, residual, ln_g, ln_b)


def flash_attention_quant(qkv, num_heads, head_dim):
    """qkv: (B, L, 3*dim) bf16 fused projection output (q|k|v along the last dim).
       Returns per-token int8 attention output + scales (quant fused in-kernel)."""
    bsz, qlen, three_dim = qkv.shape
    dim = three_dim // 3
    tq = _pick_tile(qlen, 128, 8)
    tk = _pick_tile(qlen, 256, 8)
    scale = 1.0 / math.sqrt(head_dim)
    kernel = functools.partial(_flash_attn_quant_kernel, num_heads=num_heads,
                               head_dim=head_dim, scale=scale)
    return pl.pallas_call(
        kernel,
        out_shape=(jax.ShapeDtypeStruct((bsz, qlen, dim), jnp.int8),
                   jax.ShapeDtypeStruct((bsz, qlen, 1), jnp.float32)),
        grid=(bsz, qlen // tq, qlen // tk),
        in_specs=[
            pl.BlockSpec((1, tq, dim), lambda b, qi, ki: (b, qi, 0)),   # Q columns
            pl.BlockSpec((1, tk, dim), lambda b, qi, ki: (b, ki, 1)),   # K columns
            pl.BlockSpec((1, tk, dim), lambda b, qi, ki: (b, ki, 2)),   # V columns
        ],
        out_specs=(pl.BlockSpec((1, tq, dim), lambda b, qi, ki: (b, qi, 0)),
                   pl.BlockSpec((1, tq, 1), lambda b, qi, ki: (b, qi, 0))),
        scratch_shapes=[pltpu.VMEM((tq, num_heads), jnp.float32),   # running max
                        pltpu.VMEM((tq, num_heads), jnp.float32),   # running sum
                        pltpu.VMEM((tq, dim), jnp.float32)],        # accumulator
        compiler_params=pltpu.CompilerParams(
            dimension_semantics=("parallel", "parallel", "arbitrary")),
    )(qkv, qkv, qkv)


# ----------------------------------------------------------------------------
# parameters (deterministic synthetic init; shapes from the module __init__)
# ----------------------------------------------------------------------------
def init_params(key, dim, num_heads, ffn_mult=4, num_ada_embeddings=8):
    inner = dim * ffn_mult
    ks = jax.random.split(key, 24)

    def int8_wt(k, k_in, k_out):
        # Stored pre-transposed (in_features, out_features): no HBM .T per call.
        return jax.random.randint(k, (k_in, k_out), -127, 128, dtype=jnp.int32).astype(jnp.int8)

    def wscale(k, n_out):
        return jax.random.uniform(k, (1, n_out), jnp.float32, 0.005, 0.02)

    q_wt, k_wt, v_wt = (int8_wt(ks[i], dim, dim) for i in (3, 5, 7))
    q_ws, k_ws, v_ws = (wscale(ks[i], dim) for i in (4, 6, 8))

    params = {
        # AdaLayerNorm: Embedding(num_ada, dim), Linear(dim -> 2*dim) pre-transposed
        "ada_emb": 0.1 * jax.random.normal(ks[0], (num_ada_embeddings, dim), jnp.float32),
        "ada_lin_wt": 0.1 * jax.random.normal(ks[1], (dim, 2 * dim), jnp.float32),
        "ada_lin_b": 0.01 * jax.random.normal(ks[2], (2 * dim,), jnp.float32),
        # attn1: fused Q/K/V projection (single W8A8 GEMM), out projection
        "qkv_wt": jnp.concatenate([q_wt, k_wt, v_wt], axis=1),
        "qkv_ws": jnp.concatenate([q_ws, k_ws, v_ws], axis=1),
        "qkv_b": jnp.zeros((1, 3 * dim), jnp.float32),          # attention_bias=False
        "o_wt": int8_wt(ks[9], dim, dim), "o_ws": wscale(ks[10], dim),
        "o_b": 0.01 * jax.random.normal(ks[11], (1, dim), jnp.float32),
        # layer_norm3: weight=ones, bias=zeros (per module __init__)
        "ln3_g": jnp.ones((1, dim), jnp.float32),
        "ln3_b": jnp.zeros((1, dim), jnp.float32),
        # ff: fc1 dim->inner, fc2 inner->dim
        "fc1_wt": int8_wt(ks[12], dim, inner), "fc1_ws": wscale(ks[13], inner),
        "fc1_b": 0.01 * jax.random.normal(ks[14], (1, inner), jnp.float32),
        "fc2_wt": int8_wt(ks[15], inner, dim), "fc2_ws": wscale(ks[16], dim),
        "fc2_b": 0.01 * jax.random.normal(ks[17], (1, dim), jnp.float32),
    }
    return params


# ----------------------------------------------------------------------------
# forward
# ----------------------------------------------------------------------------
def quant_basic_transformer_block(params, hidden_states, temb, num_heads, int8_mxu=None):
    """hidden_states: (bsz, qlen, dim) f16, temb: scalar int (timestep index).
       Returns (bsz*qlen, dim) f16 -- same as the torch module's forward."""
    if int8_mxu is None:
        int8_mxu = _mxu_supports_int8()
    bsz, qlen, dim = hidden_states.shape
    head_dim = dim // num_heads
    n = bsz * qlen

    # Activations flow between kernels in bf16; f32 math happens in-kernel.
    x = hidden_states.astype(jnp.bfloat16).reshape(n, dim)
    residual = x

    # --- norm1: AdaLayerNorm conditioning (tiny (dim,) glue) + fused LN-mod-quant ---
    e = params["ada_emb"][temb]                                  # (dim,)
    e = e * jax.nn.sigmoid(e)                                    # SiLU
    sc_sh = e @ params["ada_lin_wt"] + params["ada_lin_b"]       # (2*dim,)
    ada_scale = sc_sh[:dim].reshape(1, dim)
    ada_shift = sc_sh[dim:].reshape(1, dim)
    qx, qs = adanorm_quant(x, ada_scale, ada_shift)

    # --- attn1: fused QKV W8A8 GEMM -> bf16, flash attention w/ fused output quant ---
    qkv = w8a8_gemm(qx, qs, params["qkv_wt"], params["qkv_ws"], params["qkv_b"],
                    out_dtype=jnp.bfloat16, int8_mxu=int8_mxu)
    qkv = qkv.reshape(bsz, qlen, 3 * dim)
    aqx, aqs = flash_attention_quant(qkv, num_heads, head_dim)
    aqx = aqx.reshape(n, dim)
    aqs = aqs.reshape(n, 1)

    # --- out_proj fused with first residual add + LayerNorm3 + quant ---
    hidden1, lqx, lqs = w8a8_gemm_res_ln_quant(
        aqx, aqs, params["o_wt"], params["o_ws"], params["o_b"],
        residual, params["ln3_g"], params["ln3_b"], int8_mxu=int8_mxu)

    # --- ff: fc1 fused with GELU+quant, fc2 fused with second residual add ---
    gqx, gqs = w8a8_gemm_quant(lqx, lqs, params["fc1_wt"], params["fc1_ws"],
                               params["fc1_b"], gelu=True, int8_mxu=int8_mxu)
    hidden2 = w8a8_gemm(gqx, gqs, params["fc2_wt"], params["fc2_ws"], params["fc2_b"],
                        residual=hidden1, out_dtype=jnp.bfloat16, int8_mxu=int8_mxu)

    return hidden2.astype(jnp.float16)


# ----------------------------------------------------------------------------
if __name__ == "__main__":
    # Small but TPU-tile-aligned shapes: dim multiple of 128, head_dim = 128.
    bsz, qlen, dim, num_heads = 2, 64, 256, 2

    key = jax.random.PRNGKey(0)
    kx, kp = jax.random.split(key, 2)
    hidden_states = jax.random.normal(kx, (bsz, qlen, dim), jnp.float32).astype(jnp.float16)
    temb = jnp.array(3, dtype=jnp.int32)   # timestep index for AdaLayerNorm embedding

    params = init_params(kp, dim, num_heads)

    out = quant_basic_transformer_block(params, hidden_states, temb, num_heads)
    out = jax.block_until_ready(out)

    assert out.shape == (bsz * qlen, dim), out.shape
    assert out.dtype == jnp.float16, out.dtype
    assert bool(jnp.all(jnp.isfinite(out.astype(jnp.float32))))
    print("KERNEL_OK")
</pallas_src>

<mosaic_0001>
module attributes {stable_mosaic.version = 11 : i64} {
  func.func @_adanorm_quant_kernel(%arg0: i32, %arg1: memref<128x256xbf16, #tpu.memory_space<vmem>>, %arg2: memref<1x256xf32, #tpu.memory_space<vmem>>, %arg3: memref<1x256xf32, #tpu.memory_space<vmem>>, %arg4: memref<128x256xi8, #tpu.memory_space<vmem>>, %arg5: memref<128x1xf32, #tpu.memory_space<vmem>>) attributes {dimension_semantics = [#tpu.dimension_semantics<parallel>], iteration_bounds = array<i64: 1>, scalar_prefetch = 0 : i64, scratch_operands = 0 : i64, tpu.core_type = #tpu.core_type<tc>, window_params = [{transform_indices = @transform_0, window_bounds = array<i64: 128, 256>}, {pipeline_mode = #tpu.pipeline_mode<synchronous>, transform_indices = @transform_1, window_bounds = array<i64: 1, 256>}, {pipeline_mode = #tpu.pipeline_mode<synchronous>, transform_indices = @transform_2, window_bounds = array<i64: 1, 256>}, {transform_indices = @transform_3, window_bounds = array<i64: 128, 256>}, {transform_indices = @transform_4, window_bounds = array<i64: 128, 1>}]} {
    %c0 = arith.constant 0 : index
    %c0_0 = arith.constant 0 : index
    %0 = vector.load %arg1[%c0, %c0_0] : memref<128x256xbf16, #tpu.memory_space<vmem>>, vector<128x256xbf16>
    %1 = arith.extf %0 : vector<128x256xbf16> to vector<128x256xf32>
    %cst = arith.constant dense<0.000000e+00> : vector<128xf32>
    %2 = vector.multi_reduction <add>, %1, %cst [1] : vector<128x256xf32> to vector<128xf32>
    %3 = vector.shape_cast %2 : vector<128xf32> to vector<128x1xf32>
    %cst_1 = arith.constant 2.560000e+02 : f32
    %4 = vector.broadcast %cst_1 : f32 to vector<128x1xf32>
    %5 = arith.divf %3, %4 : vector<128x1xf32>
    %6 = vector.broadcast %5 : vector<128x1xf32> to vector<128x256xf32>
    %7 = arith.subf %1, %6 : vector<128x256xf32>
    %8 = arith.mulf %7, %7 : vector<128x256xf32>
    %cst_2 = arith.constant dense<0.000000e+00> : vector<128xf32>
    %9 = vector.multi_reduction <add>, %8, %cst_2 [1] : vector<128x256xf32> to vector<128xf32>
    %10 = vector.shape_cast %9 : vector<128xf32> to vector<128x1xf32>
    %cst_3 = arith.constant 2.560000e+02 : f32
    %11 = vector.broadcast %cst_3 : f32 to vector<128x1xf32>
    %12 = arith.divf %10, %11 : vector<128x1xf32>
    %13 = vector.broadcast %5 : vector<128x1xf32> to vector<128x256xf32>
    %14 = arith.subf %1, %13 : vector<128x256xf32>
    %cst_4 = arith.constant 9.99999974E-6 : f32
    %15 = vector.broadcast %cst_4 : f32 to vector<128x1xf32>
    %16 = arith.addf %12, %15 : vector<128x1xf32>
    %17 = math.rsqrt %16 : vector<128x1xf32>
    %18 = vector.broadcast %17 : vector<128x1xf32> to vector<128x256xf32>
    %19 = arith.mulf %14, %18 : vector<128x256xf32>
    %c0_5 = arith.constant 0 : index
    %c0_6 = arith.constant 0 : index
    %20 = vector.load %arg2[%c0_5, %c0_6] : memref<1x256xf32, #tpu.memory_space<vmem>>, vector<1x256xf32>
    %cst_7 = arith.constant 1.000000e+00 : f32
    %21 = vector.broadcast %cst_7 : f32 to vector<1x256xf32>
    %22 = arith.addf %21, %20 : vector<1x256xf32>
    %23 = vector.broadcast %22 : vector<1x256xf32> to vector<128x256xf32>
    %24 = arith.mulf %19, %23 : vector<128x256xf32>
    %c0_8 = arith.constant 0 : index
    %c0_9 = arith.constant 0 : index
    %25 = vector.load %arg3[%c0_8, %c0_9] : memref<1x256xf32, #tpu.memory_space<vmem>>, vector<1x256xf32>
    %26 = vector.broadcast %25 : vector<1x256xf32> to vector<128x256xf32>
    %27 = arith.addf %24, %26 : vector<128x256xf32>
    %28 = math.absf %27 : vector<128x256xf32>
    %cst_10 = arith.constant dense<0xFF800000> : vector<128xf32>
    %29 = vector.multi_reduction <maximumf>, %28, %cst_10 [1] : vector<128x256xf32> to vector<128xf32>
    %30 = vector.shape_cast %29 : vector<128xf32> to vector<128x1xf32>
    %cst_11 = arith.constant 9.99999997E-7 : f32
    %31 = vector.broadcast %cst_11 : f32 to vector<128x1xf32>
    %32 = arith.maximumf %30, %31 : vector<128x1xf32>
    %cst_12 = arith.constant 1.270000e+02 : f32
    %33 = vector.broadcast %cst_12 : f32 to vector<128x1xf32>
    %34 = arith.divf %33, %32 : vector<128x1xf32>
    %35 = vector.broadcast %34 : vector<128x1xf32> to vector<128x256xf32>
    %36 = arith.mulf %27, %35 : vector<128x256xf32>
    %37 = math.roundeven %36 : vector<128x256xf32>
    %cst_13 = arith.constant -1.270000e+02 : f32
    %cst_14 = arith.constant 1.270000e+02 : f32
    %38 = vector.broadcast %cst_13 : f32 to vector<128x256xf32>
    %39 = arith.maximumf %38, %37 : vector<128x256xf32>
    %40 = vector.broadcast %cst_14 : f32 to vector<128x256xf32>
    %41 = arith.minimumf %40, %39 : vector<128x256xf32>
    %42 = arith.fptosi %41 : vector<128x256xf32> to vector<128x256xi8>
    %cst_15 = arith.constant 0.00787401571 : f32
    %43 = vector.broadcast %cst_15 : f32 to vector<128x1xf32>
    %44 = arith.mulf %32, %43 : vector<128x1xf32>
    %c0_16 = arith.constant 0 : index
    %c0_17 = arith.constant 0 : index
    %45 = vector.load %arg4[%c0_16, %c0_17] : memref<128x256xi8, #tpu.memory_space<vmem>>, vector<128x256xi8>
    tpu.vector_store %arg4[%c0_16, %c0_17], %42 {strides = array<i32>} : memref<128x256xi8, #tpu.memory_space<vmem>>, vector<128x256xi8>,
    %c0_18 = arith.constant 0 : index
    %c0_19 = arith.constant 0 : index
    %46 = vector.load %arg5[%c0_18, %c0_19] : memref<128x1xf32, #tpu.memory_space<vmem>>, vector<128x1xf32>
    tpu.vector_store %arg5[%c0_18, %c0_19], %44 {strides = array<i32>} : memref<128x1xf32, #tpu.memory_space<vmem>>, vector<128x1xf32>,
    return
  }
  func.func @transform_0(%arg0: i32) -> (i32, i32) {
    %c0_i32 = arith.constant 0 : i32
    %c0_i32_0 = arith.constant 0 : i32
    return %arg0, %c0_i32 : i32, i32
  }
  func.func @transform_1(%arg0: i32) -> (i32, i32) {
    %c0_i32 = arith.constant 0 : i32
    %c0_i32_0 = arith.constant 0 : i32
    %c0_i32_1 = arith.constant 0 : i32
    return %c0_i32, %c0_i32_0 : i32, i32
  }
  func.func @transform_2(%arg0: i32) -> (i32, i32) {
    %c0_i32 = arith.constant 0 : i32
    %c0_i32_0 = arith.constant 0 : i32
    %c0_i32_1 = arith.constant 0 : i32
    return %c0_i32, %c0_i32_0 : i32, i32
  }
  func.func @transform_3(%arg0: i32) -> (i32, i32) {
    %c0_i32 = arith.constant 0 : i32
    %c0_i32_0 = arith.constant 0 : i32
    return %arg0, %c0_i32 : i32, i32
  }
  func.func @transform_4(%arg0: i32) -> (i32, i32) {
    %c0_i32 = arith.constant 0 : i32
    %c0_i32_0 = arith.constant 0 : i32
    return %arg0, %c0_i32 : i32, i32
  }
}

</mosaic_0001>

<llo_original>
// kernel: tpu_custom_call.1
$region0: #{tpu_custom_call.1}
  #allocation0 [shape = 'u32[]', space=smem, size = 0x4, offset = 0x4, fixed_abs, tag = 'smem constant byte address 0x4 - core index']
  #allocation1 [shape = 'u32[72,128]{1,0:T(1,128)}', space=vmem, size = 0x9000, scoped, tag = 'internal scratch']
  %s0 = inlined_call_operand.hbm [shape: bf16[128,256], index: 0, kind: input, shape index: {}]
  %s1 = inlined_call_operand.hbm [shape: f32[1,256], index: 1, kind: input, shape index: {}]
  %s2 = inlined_call_operand.hbm [shape: f32[1,256], index: 2, kind: input, shape index: {}]
  %s3 = inlined_call_operand.hbm [shape: s8[128,256], index: 3, kind: output, shape index: {0}]
  %s4 = inlined_call_operand.vmem [shape: f32[128,1], index: 4, kind: output, shape index: {1}]
  %5 = xla_tuple %s3, %s4
  %s6 = sld [smem:[#allocation0]]
  $region42: #{tpu_custom_call.1} parent=0
    _
  %s8 = ssub.s32 1, %s6
  %s9 = scalar_select 0, %s8, %s6
  $region1: #{tpu_custom_call.1} parent=0
    #allocation2 [shape = 'u8[65536]{0}', space=vmem, size = 0x10000, scoped, tag = 'input window, operand 0, single buffered']
    #allocation3 [shape = 's32[1]{0}', space=sflag, size = 0x4, scoped, tag = 'scoped memory for tpu_custom_call.1']
    #allocation4 [shape = 's32[1]{0}', space=sflag, size = 0x4, scoped, tag = 'scoped memory for tpu_custom_call.1']
    #allocation5 [shape = 'u8[1024]{0}', space=vmem, size = 0x400, scoped, tag = 'input window, operand 1, single buffered']
    #allocation6 [shape = 's32[1]{0}', space=sflag, size = 0x4, scoped, tag = 'scoped memory for tpu_custom_call.1']
    #allocation7 [shape = 'u8[1024]{0}', space=vmem, size = 0x400, scoped, tag = 'input window, operand 2, single buffered']
    #allocation8 [shape = 'u8[32768]{0}', space=vmem, size = 0x8000, scoped, tag = 'output window, operand 0, single buffered']
    %10 = vsyncpa [#allocation3], 0
    %11 = vsyncpa [#allocation6], 0
    %12 = vsyncpa [#allocation4], 0
    // Predicated region
    $region2: #{tpu_custom_call.1} parent=1 // pred_check
      _
    $region3: #{tpu_custom_call.1} parent=1 // pred_check_branch
      %14 = sbr.rel (0) target = $region5
    $region4: #{tpu_custom_call.1} parent=1 // pred_region
      %16 = vsyncadd [#allocation3], 0
      %s17 = sshll.u32 %s0, 4
      %s18 = int_to_ptr.hbm [resolvable:$true] %s17
      %s19 = sshll.u32 [#allocation2], 4
      %s20 = int_to_ptr.vmem [resolvable:$true] %s19
      %25 = dma.hbm_to_vmem [thread:$0]  %s18, 2048, %s20, [#allocation3], 128, 128, 8
    $region5: #{tpu_custom_call.1} parent=1 // pred_fallthru
      _
    // Predicated region
    $region6: #{tpu_custom_call.1} parent=1 // pred_check
      _
    $region7: #{tpu_custom_call.1} parent=1 // pred_check_branch
      %27 = sbr.rel (0) target = $region9
    $region8: #{tpu_custom_call.1} parent=1 // pred_region
      %29 = vsyncadd [#allocation6], 0
      %s31 = sshll.u32 %s1, 4
      %s32 = int_to_ptr.hbm [resolvable:$true] %s31
      %s33 = sshll.u32 [#allocation5], 4
      %s34 = int_to_ptr.vmem [resolvable:$true] %s33
      %36 = dma.hbm_to_vmem [thread:$0]  %s32, 32, %s34, [#allocation6]
    $region9: #{tpu_custom_call.1} parent=1 // pred_fallthru
      _
    // Predicated region
    $region10: #{tpu_custom_call.1} parent=1 // pred_check
      _
    $region11: #{tpu_custom_call.1} parent=1 // pred_check_branch
      %38 = sbr.rel (0) target = $region13
    $region12: #{tpu_custom_call.1} parent=1 // pred_region
      %40 = vsyncadd [#allocation6], 0
      %s42 = sshll.u32 %s2, 4
      %s43 = int_to_ptr.hbm [resolvable:$true] %s42
      %s44 = sshll.u32 [#allocation7], 4
      %s45 = int_to_ptr.vmem [resolvable:$true] %s44
      %47 = dma.hbm_to_vmem [thread:$0]  %s43, 32, %s45, [#allocation6]
    $region13: #{tpu_custom_call.1} parent=1 // pred_fallthru
      _
    // Predicated region
    $region14: #{tpu_custom_call.1} parent=1 // pred_check
      _
    $region15: #{tpu_custom_call.1} parent=1 // pred_check_branch
      %49 = sbr.rel (0) target = $region17
    $region16: #{tpu_custom_call.1} parent=1 // pred_region
      %51 = dma.done [#allocation3], 2048
    $region17: #{tpu_custom_call.1} parent=1 // pred_fallthru
      _
    // Predicated region
    $region18: #{tpu_custom_call.1} parent=1 // pred_check
      _
    $region19: #{tpu_custom_call.1} parent=1 // pred_check_branch
      %53 = sbr.rel (0) target = $region21
    $region20: #{tpu_custom_call.1} parent=1 // pred_region
      %55 = dma.done [#allocation6], 32
    $region21: #{tpu_custom_call.1} parent=1 // pred_fallthru
      _
    // Predicated region
    $region22: #{tpu_custom_call.1} parent=1 // pred_check
      _
    $region23: #{tpu_custom_call.1} parent=1 // pred_check_branch
      %57 = sbr.rel (0) target = $region25
    $region24: #{tpu_custom_call.1} parent=1 // pred_region
      %59 = dma.done [#allocation6], 32
    $region25: #{tpu_custom_call.1} parent=1 // pred_fallthru
      _
    %v60 = vld [vmem:[#allocation2] sm:$0xff]
    %v61 = vld [vmem:[#allocation2 + $0x8] sm:$0xff]
    %v62 = vld [vmem:[#allocation2 + $0x10] sm:$0xff]
    %v63 = vld [vmem:[#allocation2 + $0x18] sm:$0xff]
    %v64 = vld [vmem:[#allocation2 + $0x20] sm:$0xff]
    %v65 = vld [vmem:[#allocation2 + $0x28] sm:$0xff]
    %v66 = vld [vmem:[#allocation2 + $0x30] sm:$0xff]
    %v67 = vld [vmem:[#allocation2 + $0x38] sm:$0xff]
    %v68 = vld [vmem:[#allocation2 + $0x40] sm:$0xff]
    %v69 = vld [vmem:[#allocation2 + $0x48] sm:$0xff]
    %v70 = vld [vmem:[#allocation2 + $0x50] sm:$0xff]
    %v71 = vld [vmem:[#allocation2 + $0x58] sm:$0xff]
    %v72 = vld [vmem:[#allocation2 + $0x60] sm:$0xff]
    %v73 = vld [vmem:[#allocation2 + $0x68] sm:$0xff]
    %v74 = vld [vmem:[#allocation2 + $0x70] sm:$0xff]
    %v75 = vld [vmem:[#allocation2 + $0x78] sm:$0xff]
    %v76 = vunpack.c.l.bf16 %v60
    %v77 = vunpack.c.h.bf16 %v60
    %v78 = vunpack.c.l.bf16 %v61
    %v79 = vunpack.c.h.bf16 %v61
    %v80 = vunpack.c.l.bf16 %v62
    %v81 = vunpack.c.h.bf16 %v62
    %v82 = vunpack.c.l.bf16 %v63
    %v83 = vunpack.c.h.bf16 %v63
    %v84 = vunpack.c.l.bf16 %v64
    %v85 = vunpack.c.h.bf16 %v64
    %v86 = vunpack.c.l.bf16 %v65
    %v87 = vunpack.c.h.bf16 %v65
    %v88 = vunpack.c.l.bf16 %v66
    %v89 = vunpack.c.h.bf16 %v66
    %v90 = vunpack.c.l.bf16 %v67
    %v91 = vunpack.c.h.bf16 %v67
    %v92 = vunpack.c.l.bf16 %v68
    %v93 = vunpack.c.h.bf16 %v68
    %v94 = vunpack.c.l.bf16 %v69
    %v95 = vunpack.c.h.bf16 %v69
    %v96 = vunpack.c.l.bf16 %v70
    %v97 = vunpack.c.h.bf16 %v70
    %v98 = vunpack.c.l.bf16 %v71
    %v99 = vunpack.c.h.bf16 %v71
    %v100 = vunpack.c.l.bf16 %v72
    %v101 = vunpack.c.h.bf16 %v72
    %v102 = vunpack.c.l.bf16 %v73
    %v103 = vunpack.c.h.bf16 %v73
    %v104 = vunpack.c.l.bf16 %v74
    %v105 = vunpack.c.h.bf16 %v74
    %v106 = vunpack.c.l.bf16 %v75
    %v107 = vunpack.c.h.bf16 %v75
    %v108 = vadd.f32 %v76, %v77
    %109 = vadd.xlane.f32.xlu0 %v108
    %v110 = vpop.xlane.xlu0 %109
    %v111 = vadd.f32 %v78, %v79
    %112 = vadd.xlane.f32.xlu0 %v111
    %v113 = vpop.xlane.xlu0 %112
    %v114 = vadd.f32 %v80, %v81
    %115 = vadd.xlane.f32.xlu0 %v114
    %v116 = vpop.xlane.xlu0 %115
    %v117 = vadd.f32 %v82, %v83
    %118 = vadd.xlane.f32.xlu0 %v117
    %v119 = vpop.xlane.xlu0 %118
    %v120 = vadd.f32 %v84, %v85
    %121 = vadd.xlane.f32.xlu0 %v120
    %v122 = vpop.xlane.xlu0 %121
    %v123 = vadd.f32 %v86, %v87
    %124 = vadd.xlane.f32.xlu0 %v123
    %v125 = vpop.xlane.xlu0 %124
    %v126 = vadd.f32 %v88, %v89
    %127 = vadd.xlane.f32.xlu0 %v126
    %v128 = vpop.xlane.xlu0 %127
    %v129 = vadd.f32 %v90, %v91
    %130 = vadd.xlane.f32.xlu0 %v129
    %v131 = vpop.xlane.xlu0 %130
    %v132 = vadd.f32 %v92, %v93
    %133 = vadd.xlane.f32.xlu0 %v132
    %v134 = vpop.xlane.xlu0 %133
    %v135 = vadd.f32 %v94, %v95
    %136 = vadd.xlane.f32.xlu0 %v135
    %v137 = vpop.xlane.xlu0 %136
    %v138 = vadd.f32 %v96, %v97
    %139 = vadd.xlane.f32.xlu0 %v138
    %v140 = vpop.xlane.xlu0 %139
    %v141 = vadd.f32 %v98, %v99
    %142 = vadd.xlane.f32.xlu0 %v141
    %v143 = vpop.xlane.xlu0 %142
    %v144 = vadd.f32 %v100, %v101
    %145 = vadd.xlane.f32.xlu0 %v144
    %v146 = vpop.xlane.xlu0 %145
    %v147 = vadd.f32 %v102, %v103
    %148 = vadd.xlane.f32.xlu0 %v147
    %v149 = vpop.xlane.xlu0 %148
    %v150 = vadd.f32 %v104, %v105
    %151 = vadd.xlane.f32.xlu0 %v150
    %v152 = vpop.xlane.xlu0 %151
    %v153 = vadd.f32 %v106, %v107
    %154 = vadd.xlane.f32.xlu0 %v153
    %v155 = vpop.xlane.xlu0 %154
    %v156 = vrcp.pop 256.0
    %v157 = vmul.f32 256.0, %v156
    %v158 = vsub.f32 1.0, %v157
    %v159 = vmul.f32 %v156, %v158
    %v160 = vadd.f32 %v156, %v159
    %vm161 = vweird.f32 %v156
    %v162 = vsel %vm161, %v156, %v160
    %v163 = vmul.f32 %v110, %v162
    %v164 = vmul.f32 %v113, %v162
    %v165 = vmul.f32 %v116, %v162
    %v166 = vmul.f32 %v119, %v162
    %v167 = vmul.f32 %v122, %v162
    %v168 = vmul.f32 %v125, %v162
    %v169 = vmul.f32 %v128, %v162
    %v170 = vmul.f32 %v131, %v162
    %v171 = vmul.f32 %v134, %v162
    %v172 = vmul.f32 %v137, %v162
    %v173 = vmul.f32 %v140, %v162
    %v174 = vmul.f32 %v143, %v162
    %v175 = vmul.f32 %v146, %v162
    %v176 = vmul.f32 %v149, %v162
    %v177 = vmul.f32 %v152, %v162
    %v178 = vmul.f32 %v155, %v162
    %v179 = vsub.f32 %v76, %v163
    %v180 = vsub.f32 %v77, %v163
    %v181 = vsub.f32 %v78, %v164
    %v182 = vsub.f32 %v79, %v164
    %v183 = vsub.f32 %v80, %v165
    %v184 = vsub.f32 %v81, %v165
    %v185 = vsub.f32 %v82, %v166
    %v186 = vsub.f32 %v83, %v166
    %v187 = vsub.f32 %v84, %v167
    %v188 = vsub.f32 %v85, %v167
    %v189 = vsub.f32 %v86, %v168
    %v190 = vsub.f32 %v87, %v168
    %v191 = vsub.f32 %v88, %v169
    %v192 = vsub.f32 %v89, %v169
    %v193 = vsub.f32 %v90, %v170
    %v194 = vsub.f32 %v91, %v170
    %v195 = vsub.f32 %v92, %v171
    %v196 = vsub.f32 %v93, %v171
    %v197 = vsub.f32 %v94, %v172
    %v198 = vsub.f32 %v95, %v172
    %v199 = vsub.f32 %v96, %v173
    %v200 = vsub.f32 %v97, %v173
    %v201 = vsub.f32 %v98, %v174
    %v202 = vsub.f32 %v99, %v174
    %v203 = vsub.f32 %v100, %v175
    %v204 = vsub.f32 %v101, %v175
    %v205 = vsub.f32 %v102, %v176
    %v206 = vsub.f32 %v103, %v176
    %v207 = vsub.f32 %v104, %v177
    %v208 = vsub.f32 %v105, %v177
    %v209 = vsub.f32 %v106, %v178
    %v210 = vsub.f32 %v107, %v178
    %v211 = vmul.f32 %v179, %v179
    %v212 = vmul.f32 %v180, %v180
    %v213 = vmul.f32 %v181, %v181
    %v214 = vmul.f32 %v182, %v182
    %v215 = vmul.f32 %v183, %v183
    %v216 = vmul.f32 %v184, %v184
    %v217 = vmul.f32 %v185, %v185
    %v218 = vmul.f32 %v186, %v186
    %v219 = vmul.f32 %v187, %v187
    %v220 = vmul.f32 %v188, %v188
    %v221 = vmul.f32 %v189, %v189
    %v222 = vmul.f32 %v190, %v190
    %v223 = vmul.f32 %v191, %v191
    %v224 = vmul.f32 %v192, %v192
    %v225 = vmul.f32 %v193, %v193
    %v226 = vmul.f32 %v194, %v194
    %v227 = vmul.f32 %v195, %v195
    %v228 = vmul.f32 %v196, %v196
    %v229 = vmul.f32 %v197, %v197
    %v230 = vmul.f32 %v198, %v198
    %v231 = vmul.f32 %v199, %v199
    %v232 = vmul.f32 %v200, %v200
    %v233 = vmul.f32 %v201, %v201
    %v234 = vmul.f32 %v202, %v202
    %v235 = vmul.f32 %v203, %v203
    %v236 = vmul.f32 %v204, %v204
    %v237 = vmul.f32 %v205, %v205
    %v238 = vmul.f32 %v206, %v206
    %v239 = vmul.f32 %v207, %v207
    %v240 = vmul.f32 %v208, %v208
    %v241 = vmul.f32 %v209, %v209
    %v242 = vmul.f32 %v210, %v210
    %v243 = vadd.f32 %v211, %v212
    %244 = vadd.xlane.f32.xlu0 %v243
    %v245 = vpop.xlane.xlu0 %244
    %v246 = vadd.f32 %v213, %v214
    %247 = vadd.xlane.f32.xlu0 %v246
    %v248 = vpop.xlane.xlu0 %247
    %v249 = vadd.f32 %v215, %v216
    %250 = vadd.xlane.f32.xlu0 %v249
    %v251 = vpop.xlane.xlu0 %250
    %v252 = vadd.f32 %v217, %v218
    %253 = vadd.xlane.f32.xlu0 %v252
    %v254 = vpop.xlane.xlu0 %253
    %v255 = vadd.f32 %v219, %v220
    %256 = vadd.xlane.f32.xlu0 %v255
    %v257 = vpop.xlane.xlu0 %256
    %v258 = vadd.f32 %v221, %v222
    %259 = vadd.xlane.f32.xlu0 %v258
    %v260 = vpop.xlane.xlu0 %259
    %v261 = vadd.f32 %v223, %v224
    %262 = vadd.xlane.f32.xlu0 %v261
    %v263 = vpop.xlane.xlu0 %262
    %v264 = vadd.f32 %v225, %v226
    %265 = vadd.xlane.f32.xlu0 %v264
    %v266 = vpop.xlane.xlu0 %265
    %v267 = vadd.f32 %v227, %v228
    %268 = vadd.xlane.f32.xlu0 %v267
    %v269 = vpop.xlane.xlu0 %268
    %v270 = vadd.f32 %v229, %v230
    %271 = vadd.xlane.f32.xlu0 %v270
    %v272 = vpop.xlane.xlu0 %271
    %v273 = vadd.f32 %v231, %v232
    %274 = vadd.xlane.f32.xlu0 %v273
    %v275 = vpop.xlane.xlu0 %274
    %v276 = vadd.f32 %v233, %v234
    %277 = vadd.xlane.f32.xlu0 %v276
    %v278 = vpop.xlane.xlu0 %277
    %v279 = vadd.f32 %v235, %v236
    %280 = vadd.xlane.f32.xlu0 %v279
    %v281 = vpop.xlane.xlu0 %280
    %v282 = vadd.f32 %v237, %v238
    %283 = vadd.xlane.f32.xlu0 %v282
    %v284 = vpop.xlane.xlu0 %283
    %v285 = vadd.f32 %v239, %v240
    %286 = vadd.xlane.f32.xlu0 %v285
    %v287 = vpop.xlane.xlu0 %286
    %v288 = vadd.f32 %v241, %v242
    %289 = vadd.xlane.f32.xlu0 %v288
    %v290 = vpop.xlane.xlu0 %289
    %v291 = vmul.f32 %v245, %v162
    %v292 = vmul.f32 %v248, %v162
    %v293 = vmul.f32 %v251, %v162
    %v294 = vmul.f32 %v254, %v162
    %v295 = vmul.f32 %v257, %v162
    %v296 = vmul.f32 %v260, %v162
    %v297 = vmul.f32 %v263, %v162
    %v298 = vmul.f32 %v266, %v162
    %v299 = vmul.f32 %v269, %v162
    %v300 = vmul.f32 %v272, %v162
    %v301 = vmul.f32 %v275, %v162
    %v302 = vmul.f32 %v278, %v162
    %v303 = vmul.f32 %v281, %v162
    %v304 = vmul.f32 %v284, %v162
    %v305 = vmul.f32 %v287, %v162
    %v306 = vmul.f32 %v290, %v162
    %v307 = vadd.f32 %v291, 1e-05
    %v308 = vadd.f32 %v292, 1e-05
    %v309 = vadd.f32 %v293, 1e-05
    %v310 = vadd.f32 %v294, 1e-05
    %v311 = vadd.f32 %v295, 1e-05
    %v312 = vadd.f32 %v296, 1e-05
    %v313 = vadd.f32 %v297, 1e-05
    %v314 = vadd.f32 %v298, 1e-05
    %v315 = vadd.f32 %v299, 1e-05
    %v316 = vadd.f32 %v300, 1e-05
    %v317 = vadd.f32 %v301, 1e-05
    %v318 = vadd.f32 %v302, 1e-05
    %v319 = vadd.f32 %v303, 1e-05
    %v320 = vadd.f32 %v304, 1e-05
    %v321 = vadd.f32 %v305, 1e-05
    %v322 = vadd.f32 %v306, 1e-05
    %v323 = vrsqrt.pop %v307
    %v324 = vmul.f32 %v323, %v307
    %v325 = vmul.f32 %v324, %v323
    %v326 = vmul.f32 0.5, %v325
    %v327 = vsub.f32 1.5, %v326
    %v328 = vmul.f32 %v323, %v327
    %vm329 = vweird.f32 %v307
    %vm330 = vweird.f32 %v323
    %vm331 = vmor %vm329, %vm330
    %v332 = vsel %vm331, %v323, %v328
    %v333 = vrsqrt.pop %v308
    %v334 = vmul.f32 %v333, %v308
    %v335 = vmul.f32 %v334, %v333
    %v336 = vmul.f32 0.5, %v335
    %v337 = vsub.f32 1.5, %v336
    %v338 = vmul.f32 %v333, %v337
    %vm339 = vweird.f32 %v308
    %vm340 = vweird.f32 %v333
    %vm341 = vmor %vm339, %vm340
    %v342 = vsel %vm341, %v333, %v338
    %v343 = vrsqrt.pop %v309
    %v344 = vmul.f32 %v343, %v309
    %v345 = vmul.f32 %v344, %v343
    %v346 = vmul.f32 0.5, %v345
    %v347 = vsub.f32 1.5, %v346
    %v348 = vmul.f32 %v343, %v347
    %vm349 = vweird.f32 %v309
    %vm350 = vweird.f32 %v343
    %vm351 = vmor %vm349, %vm350
    %v352 = vsel %vm351, %v343, %v348
    %v353 = vrsqrt.pop %v310
    %v354 = vmul.f32 %v353, %v310
    %v355 = vmul.f32 %v354, %v353
    %v356 = vmul.f32 0.5, %v355
    %v357 = vsub.f32 1.5, %v356
    %v358 = vmul.f32 %v353, %v357
    %vm359 = vweird.f32 %v310
    %vm360 = vweird.f32 %v353
    %vm361 = vmor %vm359, %vm360
    %v362 = vsel %vm361, %v353, %v358
    %v363 = vrsqrt.pop %v311
    %v364 = vmul.f32 %v363, %v311
    %v365 = vmul.f32 %v364, %v363
    %v366 = vmul.f32 0.5, %v365
    %v367 = vsub.f32 1.5, %v366
    %v368 = vmul.f32 %v363, %v367
    %vm369 = vweird.f32 %v311
    %vm370 = vweird.f32 %v363
    %vm371 = vmor %vm369, %vm370
    %v372 = vsel %vm371, %v363, %v368
    %v373 = vrsqrt.pop %v312
    %v374 = vmul.f32 %v373, %v312
    %v375 = vmul.f32 %v374, %v373
    %v376 = vmul.f32 0.5, %v375
    %v377 = vsub.f32 1.5, %v376
    %v378 = vmul.f32 %v373, %v377
    %vm379 = vweird.f32 %v312
    %vm380 = vweird.f32 %v373
    %vm381 = vmor %vm379, %vm380
    %v382 = vsel %vm381, %v373, %v378
    %v383 = vrsqrt.pop %v313
    %v384 = vmul.f32 %v383, %v313
    %v385 = vmul.f32 %v384, %v383
    %v386 = vmul.f32 0.5, %v385
    %v387 = vsub.f32 1.5, %v386
    %v388 = vmul.f32 %v383, %v387
    %vm389 = vweird.f32 %v313
    %vm390 = vweird.f32 %v383
    %vm391 = vmor %vm389, %vm390
    %v392 = vsel %vm391, %v383, %v388
    %v393 = vrsqrt.pop %v314
    %v394 = vmul.f32 %v393, %v314
    %v395 = vmul.f32 %v394, %v393
    %v396 = vmul.f32 0.5, %v395
    %v397 = vsub.f32 1.5, %v396
    %v398 = vmul.f32 %v393, %v397
    %vm399 = vweird.f32 %v314
    %vm400 = vweird.f32 %v393
    %vm401 = vmor %vm399, %vm400
    %v402 = vsel %vm401, %v393, %v398
    %v403 = vrsqrt.pop %v315
    %v404 = vmul.f32 %v403, %v315
    %v405 = vmul.f32 %v404, %v403
    %v406 = vmul.f32 0.5, %v405
    %v407 = vsub.f32 1.5, %v406
    %v408 = vmul.f32 %v403, %v407
    %vm409 = vweird.f32 %v315
    %vm410 = vweird.f32 %v403
    %vm411 = vmor %vm409, %vm410
    %v412 = vsel %vm411, %v403, %v408
    %v413 = vrsqrt.pop %v316
    %v414 = vmul.f32 %v413, %v316
    %v415 = vmul.f32 %v414, %v413
    %v416 = vmul.f32 0.5, %v415
    %v417 = vsub.f32 1.5, %v416
    %v418 = vmul.f32 %v413, %v417
    %vm419 = vweird.f32 %v316
    %vm420 = vweird.f32 %v413
    %vm421 = vmor %vm419, %vm420
    %v422 = vsel %vm421, %v413, %v418
    %v423 = vrsqrt.pop %v317
    %v424 = vmul.f32 %v423, %v317
    %v425 = vmul.f32 %v424, %v423
    %v426 = vmul.f32 0.5, %v425
    %v427 = vsub.f32 1.5, %v426
    %v428 = vmul.f32 %v423, %v427
    %vm429 = vweird.f32 %v317
    %vm430 = vweird.f32 %v423
    %vm431 = vmor %vm429, %vm430
    %v432 = vsel %vm431, %v423, %v428
    %v433 = vrsqrt.pop %v318
    %v434 = vmul.f32 %v433, %v318
    %v435 = vmul.f32 %v434, %v433
    %v436 = vmul.f32 0.5, %v435
    %v437 = vsub.f32 1.5, %v436
    %v438 = vmul.f32 %v433, %v437
    %vm439 = vweird.f32 %v318
    %vm440 = vweird.f32 %v433
    %vm441 = vmor %vm439, %vm440
    %v442 = vsel %vm441, %v433, %v438
    %v443 = vrsqrt.pop %v319
    %v444 = vmul.f32 %v443, %v319
    %v445 = vmul.f32 %v444, %v443
    %v446 = vmul.f32 0.5, %v445
    %v447 = vsub.f32 1.5, %v446
    %v448 = vmul.f32 %v443, %v447
    %vm449 = vweird.f32 %v319
    %vm450 = vweird.f32 %v443
    %vm451 = vmor %vm449, %vm450
    %v452 = vsel %vm451, %v443, %v448
    %v453 = vrsqrt.pop %v320
    %v454 = vmul.f32 %v453, %v320
    %v455 = vmul.f32 %v454, %v453
    %v456 = vmul.f32 0.5, %v455
    %v457 = vsub.f32 1.5, %v456
    %v458 = vmul.f32 %v453, %v457
    %vm459 = vweird.f32 %v320
    %vm460 = vweird.f32 %v453
    %vm461 = vmor %vm459, %vm460
    %v462 = vsel %vm461, %v453, %v458
    %v463 = vrsqrt.pop %v321
    %v464 = vmul.f32 %v463, %v321
    %v465 = vmul.f32 %v464, %v463
    %v466 = vmul.f32 0.5, %v465
    %v467 = vsub.f32 1.5, %v466
    %v468 = vmul.f32 %v463, %v467
    %vm469 = vweird.f32 %v321
    %vm470 = vweird.f32 %v463
    %vm471 = vmor %vm469, %vm470
    %v472 = vsel %vm471, %v463, %v468
    %v473 = vrsqrt.pop %v322
    %v474 = vmul.f32 %v473, %v322
    %v475 = vmul.f32 %v474, %v473
    %v476 = vmul.f32 0.5, %v475
    %v477 = vsub.f32 1.5, %v476
    %v478 = vmul.f32 %v473, %v477
    %vm479 = vweird.f32 %v322
    %vm480 = vweird.f32 %v473
    %vm481 = vmor %vm479, %vm480
    %v482 = vsel %vm481, %v473, %v478
    %v483 = vmul.f32 %v179, %v332
    %v484 = vmul.f32 %v180, %v332
    %v485 = vmul.f32 %v181, %v342
    %v486 = vmul.f32 %v182, %v342
    %v487 = vmul.f32 %v183, %v352
    %v488 = vmul.f32 %v184, %v352
    %v489 = vmul.f32 %v185, %v362
    %v490 = vmul.f32 %v186, %v362
    %v491 = vmul.f32 %v187, %v372
    %v492 = vmul.f32 %v188, %v372
    %v493 = vmul.f32 %v189, %v382
    %v494 = vmul.f32 %v190, %v382
    %v495 = vmul.f32 %v191, %v392
    %v496 = vmul.f32 %v192, %v392
    %v497 = vmul.f32 %v193, %v402
    %v498 = vmul.f32 %v194, %v402
    %v499 = vmul.f32 %v195, %v412
    %v500 = vmul.f32 %v196, %v412
    %v501 = vmul.f32 %v197, %v422
    %v502 = vmul.f32 %v198, %v422
    %v503 = vmul.f32 %v199, %v432
    %v504 = vmul.f32 %v200, %v432
    %v505 = vmul.f32 %v201, %v442
    %v506 = vmul.f32 %v202, %v442
    %v507 = vmul.f32 %v203, %v452
    %v508 = vmul.f32 %v204, %v452
    %v509 = vmul.f32 %v205, %v462
    %v510 = vmul.f32 %v206, %v462
    %v511 = vmul.f32 %v207, %v472
    %v512 = vmul.f32 %v208, %v472
    %v513 = vmul.f32 %v209, %v482
    %v514 = vmul.f32 %v210, %v482
    %v515 = vld [vmem:[#allocation5] sm:$0x3]
    %v516 = vadd.f32 %v515, 1.0
    %v518 = vperm.slane %v516, 0
    %v519 = vperm.slane %v516, 1
    %v522 = vmul.f32 %v483, %v518
    %v523 = vmul.f32 %v484, %v519
    %v524 = vmul.f32 %v485, %v518
    %v525 = vmul.f32 %v486, %v519
    %v526 = vmul.f32 %v487, %v518
    %v527 = vmul.f32 %v488, %v519
    %v528 = vmul.f32 %v489, %v518
    %v529 = vmul.f32 %v490, %v519
    %v530 = vmul.f32 %v491, %v518
    %v531 = vmul.f32 %v492, %v519
    %v532 = vmul.f32 %v493, %v518
    %v533 = vmul.f32 %v494, %v519
    %v534 = vmul.f32 %v495, %v518
    %v535 = vmul.f32 %v496, %v519
    %v536 = vmul.f32 %v497, %v518
    %v537 = vmul.f32 %v498, %v519
    %v538 = vmul.f32 %v499, %v518
    %v539 = vmul.f32 %v500, %v519
    %v540 = vmul.f32 %v501, %v518
    %v541 = vmul.f32 %v502, %v519
    %v542 = vmul.f32 %v503, %v518
    %v543 = vmul.f32 %v504, %v519
    %v544 = vmul.f32 %v505, %v518
    %v545 = vmul.f32 %v506, %v519
    %v546 = vmul.f32 %v507, %v518
    %v547 = vmul.f32 %v508, %v519
    %v548 = vmul.f32 %v509, %v518
    %v549 = vmul.f32 %v510, %v519
    %v550 = vmul.f32 %v511, %v518
    %v551 = vmul.f32 %v512, %v519
    %v552 = vmul.f32 %v513, %v518
    %v553 = vmul.f32 %v514, %v519
    %v554 = vld [vmem:[#allocation7] sm:$0x3]
    %v556 = vperm.slane %v554, 0
    %v557 = vperm.slane %v554, 1
    %v560 = vadd.f32 %v522, %v556
    %v561 = vadd.f32 %v523, %v557
    %v562 = vadd.f32 %v524, %v556
    %v563 = vadd.f32 %v525, %v557
    %v564 = vadd.f32 %v526, %v556
    %v565 = vadd.f32 %v527, %v557
    %v566 = vadd.f32 %v528, %v556
    %v567 = vadd.f32 %v529, %v557
    %v568 = vadd.f32 %v530, %v556
    %v569 = vadd.f32 %v531, %v557
    %v570 = vadd.f32 %v532, %v556
    %v571 = vadd.f32 %v533, %v557
    %v572 = vadd.f32 %v534, %v556
    %v573 = vadd.f32 %v535, %v557
    %v574 = vadd.f32 %v536, %v556
    %v575 = vadd.f32 %v537, %v557
    %v576 = vadd.f32 %v538, %v556
    %v577 = vadd.f32 %v539, %v557
    %v578 = vadd.f32 %v540, %v556
    %v579 = vadd.f32 %v541, %v557
    %v580 = vadd.f32 %v542, %v556
    %v581 = vadd.f32 %v543, %v557
    %v582 = vadd.f32 %v544, %v556
    %v583 = vadd.f32 %v545, %v557
    %v584 = vadd.f32 %v546, %v556
    %v585 = vadd.f32 %v547, %v557
    %v586 = vadd.f32 %v548, %v556
    %v587 = vadd.f32 %v549, %v557
    %v588 = vadd.f32 %v550, %v556
    %v589 = vadd.f32 %v551, %v557
    %v590 = vadd.f32 %v552, %v556
    %v591 = vadd.f32 %v553, %v557
    %v592 = vand.u32 2147483647, %v560
    %v593 = vand.u32 2147483647, %v561
    %v594 = vand.u32 2147483647, %v562
    %v595 = vand.u32 2147483647, %v563
    %v596 = vand.u32 2147483647, %v564
    %v597 = vand.u32 2147483647, %v565
    %v598 = vand.u32 2147483647, %v566
    %v599 = vand.u32 2147483647, %v567
    %v600 = vand.u32 2147483647, %v568
    %v601 = vand.u32 2147483647, %v569
    %v602 = vand.u32 2147483647, %v570
    %v603 = vand.u32 2147483647, %v571
    %v604 = vand.u32 2147483647, %v572
    %v605 = vand.u32 2147483647, %v573
    %v606 = vand.u32 2147483647, %v574
    %v607 = vand.u32 2147483647, %v575
    %v608 = vand.u32 2147483647, %v576
    %v609 = vand.u32 2147483647, %v577
    %v610 = vand.u32 2147483647, %v578
    %v611 = vand.u32 2147483647, %v579
    %v612 = vand.u32 2147483647, %v580
    %v613 = vand.u32 2147483647, %v581
    %v614 = vand.u32 2147483647, %v582
    %v615 = vand.u32 2147483647, %v583
    %v616 = vand.u32 2147483647, %v584
    %v617 = vand.u32 2147483647, %v585
    %v618 = vand.u32 2147483647, %v586
    %v619 = vand.u32 2147483647, %v587
    %v620 = vand.u32 2147483647, %v588
    %v621 = vand.u32 2147483647, %v589
    %v622 = vand.u32 2147483647, %v590
    %v623 = vand.u32 2147483647, %v591
    %v624 = vmax.f32 %v592, %v593
    %625 = vmax.xlane.f32.xlu0 %v624
    %v626 = vpop.xlane.xlu0 %625
    %v627 = vmax.f32 %v594, %v595
    %628 = vmax.xlane.f32.xlu0 %v627
    %v629 = vpop.xlane.xlu0 %628
    %v630 = vmax.f32 %v596, %v597
    %631 = vmax.xlane.f32.xlu0 %v630
    %v632 = vpop.xlane.xlu0 %631
    %v633 = vmax.f32 %v598, %v599
    %634 = vmax.xlane.f32.xlu0 %v633
    %v635 = vpop.xlane.xlu0 %634
    %v636 = vmax.f32 %v600, %v601
    %637 = vmax.xlane.f32.xlu0 %v636
    %v638 = vpop.xlane.xlu0 %637
    %v639 = vmax.f32 %v602, %v603
    %640 = vmax.xlane.f32.xlu0 %v639
    %v641 = vpop.xlane.xlu0 %640
    %v642 = vmax.f32 %v604, %v605
    %643 = vmax.xlane.f32.xlu0 %v642
    %v644 = vpop.xlane.xlu0 %643
    %v645 = vmax.f32 %v606, %v607
    %646 = vmax.xlane.f32.xlu0 %v645
    %v647 = vpop.xlane.xlu0 %646
    %v648 = vmax.f32 %v608, %v609
    %649 = vmax.xlane.f32.xlu0 %v648
    %v650 = vpop.xlane.xlu0 %649
    %v651 = vmax.f32 %v610, %v611
    %652 = vmax.xlane.f32.xlu0 %v651
    %v653 = vpop.xlane.xlu0 %652
    %v654 = vmax.f32 %v612, %v613
    %655 = vmax.xlane.f32.xlu0 %v654
    %v656 = vpop.xlane.xlu0 %655
    %v657 = vmax.f32 %v614, %v615
    %658 = vmax.xlane.f32.xlu0 %v657
    %v659 = vpop.xlane.xlu0 %658
    %v660 = vmax.f32 %v616, %v617
    %661 = vmax.xlane.f32.xlu0 %v660
    %v662 = vpop.xlane.xlu0 %661
    %v663 = vmax.f32 %v618, %v619
    %664 = vmax.xlane.f32.xlu0 %v663
    %v665 = vpop.xlane.xlu0 %664
    %v666 = vmax.f32 %v620, %v621
    %667 = vmax.xlane.f32.xlu0 %v666
    %v668 = vpop.xlane.xlu0 %667
    %v669 = vmax.f32 %v622, %v623
    %670 = vmax.xlane.f32.xlu0 %v669
    %v671 = vpop.xlane.xlu0 %670
    %v672 = vmax.f32 %v626, 1e-06
    %v673 = vmax.f32 %v629, 1e-06
    %v674 = vmax.f32 %v632, 1e-06
    %v675 = vmax.f32 %v635, 1e-06
    %v676 = vmax.f32 %v638, 1e-06
    %v677 = vmax.f32 %v641, 1e-06
    %v678 = vmax.f32 %v644, 1e-06
    %v679 = vmax.f32 %v647, 1e-06
    %v680 = vmax.f32 %v650, 1e-06
    %v681 = vmax.f32 %v653, 1e-06
    %v682 = vmax.f32 %v656, 1e-06
    %v683 = vmax.f32 %v659, 1e-06
    %v684 = vmax.f32 %v662, 1e-06
    %v685 = vmax.f32 %v665, 1e-06
    %v686 = vmax.f32 %v668, 1e-06
    %v687 = vmax.f32 %v671, 1e-06
    %v688 = vrcp.pop %v672
    %v689 = vmul.f32 %v672, %v688
    %v690 = vsub.f32 1.0, %v689
    %v691 = vmul.f32 %v688, %v690
    %v692 = vadd.f32 %v688, %v691
    %vm693 = vweird.f32 %v672
    %vm694 = vweird.f32 %v688
    %vm695 = vmor %vm693, %vm694
    %v696 = vsel %vm695, %v688, %v692
    %v697 = vand.u32 2147483647, %v672
    %vm698 = vcmp.eq.f32.partialorder %v697, 8.507059e+37
    %v699 = vand.u32 %v672, 2147483648
    %v700 = vor.u32 1.1754944e-38, %v699
    %v701 = vsel %vm698, %v700, %v696
    %v702 = vmul.f32 127.0, %v701
    %v703 = vrcp.pop %v673
    %v704 = vmul.f32 %v673, %v703
    %v705 = vsub.f32 1.0, %v704
    %v706 = vmul.f32 %v703, %v705
    %v707 = vadd.f32 %v703, %v706
    %vm708 = vweird.f32 %v673
    %vm709 = vweird.f32 %v703
    %vm710 = vmor %vm708, %vm709
    %v711 = vsel %vm710, %v703, %v707
    %v712 = vand.u32 2147483647, %v673
    %vm713 = vcmp.eq.f32.partialorder %v712, 8.507059e+37
    %v714 = vand.u32 %v673, 2147483648
    %v715 = vor.u32 1.1754944e-38, %v714
    %v716 = vsel %vm713, %v715, %v711
    %v717 = vmul.f32 127.0, %v716
    %v718 = vrcp.pop %v674
    %v719 = vmul.f32 %v674, %v718
    %v720 = vsub.f32 1.0, %v719
    %v721 = vmul.f32 %v718, %v720
    %v722 = vadd.f32 %v718, %v721
    %vm723 = vweird.f32 %v674
    %vm724 = vweird.f32 %v718
    %vm725 = vmor %vm723, %vm724
    %v726 = vsel %vm725, %v718, %v722
    %v727 = vand.u32 2147483647, %v674
    %vm728 = vcmp.eq.f32.partialorder %v727, 8.507059e+37
    %v729 = vand.u32 %v674, 2147483648
    %v730 = vor.u32 1.1754944e-38, %v729
    %v731 = vsel %vm728, %v730, %v726
    %v732 = vmul.f32 127.0, %v731
    %v733 = vrcp.pop %v675
    %v734 = vmul.f32 %v675, %v733
    %v735 = vsub.f32 1.0, %v734
    %v736 = vmul.f32 %v733, %v735
    %v737 = vadd.f32 %v733, %v736
    %vm738 = vweird.f32 %v675
    %vm739 = vweird.f32 %v733
    %vm740 = vmor %vm738, %vm739
    %v741 = vsel %vm740, %v733, %v737
    %v742 = vand.u32 2147483647, %v675
    %vm743 = vcmp.eq.f32.partialorder %v742, 8.507059e+37
    %v744 = vand.u32 %v675, 2147483648
    %v745 = vor.u32 1.1754944e-38, %v744
    %v746 = vsel %vm743, %v745, %v741
    %v747 = vmul.f32 127.0, %v746
    %v748 = vrcp.pop %v676
    %v749 = vmul.f32 %v676, %v748
    %v750 = vsub.f32 1.0, %v749
    %v751 = vmul.f32 %v748, %v750
    %v752 = vadd.f32 %v748, %v751
    %vm753 = vweird.f32 %v676
    %vm754 = vweird.f32 %v748
    %vm755 = vmor %vm753, %vm754
    %v756 = vsel %vm755, %v748, %v752
    %v757 = vand.u32 2147483647, %v676
    %vm758 = vcmp.eq.f32.partialorder %v757, 8.507059e+37
    %v759 = vand.u32 %v676, 2147483648
    %v760 = vor.u32 1.1754944e-38, %v759
    %v761 = vsel %vm758, %v760, %v756
    %v762 = vmul.f32 127.0, %v761
    %v763 = vrcp.pop %v677
    %v764 = vmul.f32 %v677, %v763
    %v765 = vsub.f32 1.0, %v764
    %v766 = vmul.f32 %v763, %v765
    %v767 = vadd.f32 %v763, %v766
    %vm768 = vweird.f32 %v677
    %vm769 = vweird.f32 %v763
    %vm770 = vmor %vm768, %vm769
    %v771 = vsel %vm770, %v763, %v767
    %v772 = vand.u32 2147483647, %v677
    %vm773 = vcmp.eq.f32.partialorder %v772, 8.507059e+37
    %v774 = vand.u32 %v677, 2147483648
    %v775 = vor.u32 1.1754944e-38, %v774
    %v776 = vsel %vm773, %v775, %v771
    %v777 = vmul.f32 127.0, %v776
    %v778 = vrcp.pop %v678
    %v779 = vmul.f32 %v678, %v778
    %v780 = vsub.f32 1.0, %v779
    %v781 = vmul.f32 %v778, %v780
    %v782 = vadd.f32 %v778, %v781
    %vm783 = vweird.f32 %v678
    %vm784 = vweird.f32 %v778
    %vm785 = vmor %vm783, %vm784
    %v786 = vsel %vm785, %v778, %v782
    %v787 = vand.u32 2147483647, %v678
    %vm788 = vcmp.eq.f32.partialorder %v787, 8.507059e+37
    %v789 = vand.u32 %v678, 2147483648
    %v790 = vor.u32 1.1754944e-38, %v789
    %v791 = vsel %vm788, %v790, %v786
    %v792 = vmul.f32 127.0, %v791
    %v793 = vrcp.pop %v679
    %v794 = vmul.f32 %v679, %v793
    %v795 = vsub.f32 1.0, %v794
    %v796 = vmul.f32 %v793, %v795
    %v797 = vadd.f32 %v793, %v796
    %vm798 = vweird.f32 %v679
    %vm799 = vweird.f32 %v793
    %vm800 = vmor %vm798, %vm799
    %v801 = vsel %vm800, %v793, %v797
    %v802 = vand.u32 2147483647, %v679
    %vm803 = vcmp.eq.f32.partialorder %v802, 8.507059e+37
    %v804 = vand.u32 %v679, 2147483648
    %v805 = vor.u32 1.1754944e-38, %v804
    %v806 = vsel %vm803, %v805, %v801
    %v807 = vmul.f32 127.0, %v806
    %v808 = vrcp.pop %v680
    %v809 = vmul.f32 %v680, %v808
    %v810 = vsub.f32 1.0, %v809
    %v811 = vmul.f32 %v808, %v810
    %v812 = vadd.f32 %v808, %v811
    %vm813 = vweird.f32 %v680
    %vm814 = vweird.f32 %v808
    %vm815 = vmor %vm813, %vm814
    %v816 = vsel %vm815, %v808, %v812
    %v817 = vand.u32 2147483647, %v680
    %vm818 = vcmp.eq.f32.partialorder %v817, 8.507059e+37
    %v819 = vand.u32 %v680, 2147483648
    %v820 = vor.u32 1.1754944e-38, %v819
    %v821 = vsel %vm818, %v820, %v816
    %v822 = vmul.f32 127.0, %v821
    %v823 = vrcp.pop %v681
    %v824 = vmul.f32 %v681, %v823
    %v825 = vsub.f32 1.0, %v824
    %v826 = vmul.f32 %v823, %v825
    %v827 = vadd.f32 %v823, %v826
    %vm828 = vweird.f32 %v681
    %vm829 = vweird.f32 %v823
    %vm830 = vmor %vm828, %vm829
    %v831 = vsel %vm830, %v823, %v827
    %v832 = vand.u32 2147483647, %v681
    %vm833 = vcmp.eq.f32.partialorder %v832, 8.507059e+37
    %v834 = vand.u32 %v681, 2147483648
    %v835 = vor.u32 1.1754944e-38, %v834
    %v836 = vsel %vm833, %v835, %v831
    %v837 = vmul.f32 127.0, %v836
    %v838 = vrcp.pop %v682
    %v839 = vmul.f32 %v682, %v838
    %v840 = vsub.f32 1.0, %v839
    %v841 = vmul.f32 %v838, %v840
    %v842 = vadd.f32 %v838, %v841
    %vm843 = vweird.f32 %v682
    %vm844 = vweird.f32 %v838
    %vm845 = vmor %vm843, %vm844
    %v846 = vsel %vm845, %v838, %v842
    %v847 = vand.u32 2147483647, %v682
    %vm848 = vcmp.eq.f32.partialorder %v847, 8.507059e+37
    %v849 = vand.u32 %v682, 2147483648
    %v850 = vor.u32 1.1754944e-38, %v849
    %v851 = vsel %vm848, %v850, %v846
    %v852 = vmul.f32 127.0, %v851
    %v853 = vrcp.pop %v683
    %v854 = vmul.f32 %v683, %v853
    %v855 = vsub.f32 1.0, %v854
    %v856 = vmul.f32 %v853, %v855
    %v857 = vadd.f32 %v853, %v856
    %vm858 = vweird.f32 %v683
    %vm859 = vweird.f32 %v853
    %vm860 = vmor %vm858, %vm859
    %v861 = vsel %vm860, %v853, %v857
    %v862 = vand.u32 2147483647, %v683
    %vm863 = vcmp.eq.f32.partialorder %v862, 8.507059e+37
    %v864 = vand.u32 %v683, 2147483648
    %v865 = vor.u32 1.1754944e-38, %v864
    %v866 = vsel %vm863, %v865, %v861
    %v867 = vmul.f32 127.0, %v866
    %v868 = vrcp.pop %v684
    %v869 = vmul.f32 %v684, %v868
    %v870 = vsub.f32 1.0, %v869
    %v871 = vmul.f32 %v868, %v870
    %v872 = vadd.f32 %v868, %v871
    %vm873 = vweird.f32 %v684
    %vm874 = vweird.f32 %v868
    %vm875 = vmor %vm873, %vm874
    %v876 = vsel %vm875, %v868, %v872
    %v877 = vand.u32 2147483647, %v684
    %vm878 = vcmp.eq.f32.partialorder %v877, 8.507059e+37
    %v879 = vand.u32 %v684, 2147483648
    %v880 = vor.u32 1.1754944e-38, %v879
    %v881 = vsel %vm878, %v880, %v876
    %v882 = vmul.f32 127.0, %v881
    %v883 = vrcp.pop %v685
    %v884 = vmul.f32 %v685, %v883
    %v885 = vsub.f32 1.0, %v884
    %v886 = vmul.f32 %v883, %v885
    %v887 = vadd.f32 %v883, %v886
    %vm888 = vweird.f32 %v685
    %vm889 = vweird.f32 %v883
    %vm890 = vmor %vm888, %vm889
    %v891 = vsel %vm890, %v883, %v887
    %v892 = vand.u32 2147483647, %v685
    %vm893 = vcmp.eq.f32.partialorder %v892, 8.507059e+37
    %v894 = vand.u32 %v685, 2147483648
    %v895 = vor.u32 1.1754944e-38, %v894
    %v896 = vsel %vm893, %v895, %v891
    %v897 = vmul.f32 127.0, %v896
    %v898 = vrcp.pop %v686
    %v899 = vmul.f32 %v686, %v898
    %v900 = vsub.f32 1.0, %v899
    %v901 = vmul.f32 %v898, %v900
    %v902 = vadd.f32 %v898, %v901
    %vm903 = vweird.f32 %v686
    %vm904 = vweird.f32 %v898
    %vm905 = vmor %vm903, %vm904
    %v906 = vsel %vm905, %v898, %v902
    %v907 = vand.u32 2147483647, %v686
    %vm908 = vcmp.eq.f32.partialorder %v907, 8.507059e+37
    %v909 = vand.u32 %v686, 2147483648
    %v910 = vor.u32 1.1754944e-38, %v909
    %v911 = vsel %vm908, %v910, %v906
    %v912 = vmul.f32 127.0, %v911
    %v913 = vrcp.pop %v687
    %v914 = vmul.f32 %v687, %v913
    %v915 = vsub.f32 1.0, %v914
    %v916 = vmul.f32 %v913, %v915
    %v917 = vadd.f32 %v913, %v916
    %vm918 = vweird.f32 %v687
    %vm919 = vweird.f32 %v913
    %vm920 = vmor %vm918, %vm919
    %v921 = vsel %vm920, %v913, %v917
    %v922 = vand.u32 2147483647, %v687
    %vm923 = vcmp.eq.f32.partialorder %v922, 8.507059e+37
    %v924 = vand.u32 %v687, 2147483648
    %v925 = vor.u32 1.1754944e-38, %v924
    %v926 = vsel %vm923, %v925, %v921
    %v927 = vmul.f32 127.0, %v926
    %v928 = vmul.f32 %v560, %v702
    %v929 = vmul.f32 %v561, %v702
    %v930 = vmul.f32 %v562, %v717
    %v931 = vmul.f32 %v563, %v717
    %v932 = vmul.f32 %v564, %v732
    %v933 = vmul.f32 %v565, %v732
    %v934 = vmul.f32 %v566, %v747
    %v935 = vmul.f32 %v567, %v747
    %v936 = vmul.f32 %v568, %v762
    %v937 = vmul.f32 %v569, %v762
    %v938 = vmul.f32 %v570, %v777
    %v939 = vmul.f32 %v571, %v777
    %v940 = vmul.f32 %v572, %v792
    %v941 = vmul.f32 %v573, %v792
    %v942 = vmul.f32 %v574, %v807
    %v943 = vmul.f32 %v575, %v807
    %v944 = vmul.f32 %v576, %v822
    %v945 = vmul.f32 %v577, %v822
    %v946 = vmul.f32 %v578, %v837
    %v947 = vmul.f32 %v579, %v837
    %v948 = vmul.f32 %v580, %v852
    %v949 = vmul.f32 %v581, %v852
    %v950 = vmul.f32 %v582, %v867
    %v951 = vmul.f32 %v583, %v867
    %v952 = vmul.f32 %v584, %v882
    %v953 = vmul.f32 %v585, %v882
    %v954 = vmul.f32 %v586, %v897
    %v955 = vmul.f32 %v587, %v897
    %v956 = vmul.f32 %v588, %v912
    %v957 = vmul.f32 %v589, %v912
    %v958 = vmul.f32 %v590, %v927
    %v959 = vmul.f32 %v591, %v927
    %v960 = vround.ne.pseudo %v928
    %v961 = vround.ne.pseudo %v929
    %v962 = vround.ne.pseudo %v930
    %v963 = vround.ne.pseudo %v931
    %v964 = vround.ne.pseudo %v932
    %v965 = vround.ne.pseudo %v933
    %v966 = vround.ne.pseudo %v934
    %v967 = vround.ne.pseudo %v935
    %v968 = vround.ne.pseudo %v936
    %v969 = vround.ne.pseudo %v937
    %v970 = vround.ne.pseudo %v938
    %v971 = vround.ne.pseudo %v939
    %v972 = vround.ne.pseudo %v940
    %v973 = vround.ne.pseudo %v941
    %v974 = vround.ne.pseudo %v942
    %v975 = vround.ne.pseudo %v943
    %v976 = vround.ne.pseudo %v944
    %v977 = vround.ne.pseudo %v945
    %v978 = vround.ne.pseudo %v946
    %v979 = vround.ne.pseudo %v947
    %v980 = vround.ne.pseudo %v948
    %v981 = vround.ne.pseudo %v949
    %v982 = vround.ne.pseudo %v950
    %v983 = vround.ne.pseudo %v951
    %v984 = vround.ne.pseudo %v952
    %v985 = vround.ne.pseudo %v953
    %v986 = vround.ne.pseudo %v954
    %v987 = vround.ne.pseudo %v955
    %v988 = vround.ne.pseudo %v956
    %v989 = vround.ne.pseudo %v957
    %v990 = vround.ne.pseudo %v958
    %v991 = vround.ne.pseudo %v959
    %v992 = vmax.f32 %v960, -127.0
    %v993 = vmax.f32 %v961, -127.0
    %v994 = vmax.f32 %v962, -127.0
    %v995 = vmax.f32 %v963, -127.0
    %v996 = vmax.f32 %v964, -127.0
    %v997 = vmax.f32 %v965, -127.0
    %v998 = vmax.f32 %v966, -127.0
    %v999 = vmax.f32 %v967, -127.0
    %v1000 = vmax.f32 %v968, -127.0
    %v1001 = vmax.f32 %v969, -127.0
    %v1002 = vmax.f32 %v970, -127.0
    %v1003 = vmax.f32 %v971, -127.0
    %v1004 = vmax.f32 %v972, -127.0
    %v1005 = vmax.f32 %v973, -127.0
    %v1006 = vmax.f32 %v974, -127.0
    %v1007 = vmax.f32 %v975, -127.0
    %v1008 = vmax.f32 %v976, -127.0
    %v1009 = vmax.f32 %v977, -127.0
    %v1010 = vmax.f32 %v978, -127.0
    %v1011 = vmax.f32 %v979, -127.0
    %v1012 = vmax.f32 %v980, -127.0
    %v1013 = vmax.f32 %v981, -127.0
    %v1014 = vmax.f32 %v982, -127.0
    %v1015 = vmax.f32 %v983, -127.0
    %v1016 = vmax.f32 %v984, -127.0
    %v1017 = vmax.f32 %v985, -127.0
    %v1018 = vmax.f32 %v986, -127.0
    %v1019 = vmax.f32 %v987, -127.0
    %v1020 = vmax.f32 %v988, -127.0
    %v1021 = vmax.f32 %v989, -127.0
    %v1022 = vmax.f32 %v990, -127.0
    %v1023 = vmax.f32 %v991, -127.0
    %v1024 = vmin.f32 %v992, 127.0
    %v1025 = vmin.f32 %v993, 127.0
    %v1026 = vmin.f32 %v994, 127.0
    %v1027 = vmin.f32 %v995, 127.0
    %v1028 = vmin.f32 %v996, 127.0
    %v1029 = vmin.f32 %v997, 127.0
    %v1030 = vmin.f32 %v998, 127.0
    %v1031 = vmin.f32 %v999, 127.0
    %v1032 = vmin.f32 %v1000, 127.0
    %v1033 = vmin.f32 %v1001, 127.0
    %v1034 = vmin.f32 %v1002, 127.0
    %v1035 = vmin.f32 %v1003, 127.0
    %v1036 = vmin.f32 %v1004, 127.0
    %v1037 = vmin.f32 %v1005, 127.0
    %v1038 = vmin.f32 %v1006, 127.0
    %v1039 = vmin.f32 %v1007, 127.0
    %v1040 = vmin.f32 %v1008, 127.0
    %v1041 = vmin.f32 %v1009, 127.0
    %v1042 = vmin.f32 %v1010, 127.0
    %v1043 = vmin.f32 %v1011, 127.0
    %v1044 = vmin.f32 %v1012, 127.0
    %v1045 = vmin.f32 %v1013, 127.0
    %v1046 = vmin.f32 %v1014, 127.0
    %v1047 = vmin.f32 %v1015, 127.0
    %v1048 = vmin.f32 %v1016, 127.0
    %v1049 = vmin.f32 %v1017, 127.0
    %v1050 = vmin.f32 %v1018, 127.0
    %v1051 = vmin.f32 %v1019, 127.0
    %v1052 = vmin.f32 %v1020, 127.0
    %v1053 = vmin.f32 %v1021, 127.0
    %v1054 = vmin.f32 %v1022, 127.0
    %v1055 = vmin.f32 %v1023, 127.0
    %v1056 = vmax.f32 %v1024, -128.0
    %v1057 = vmax.f32 %v1025, -128.0
    %v1058 = vmax.f32 %v1026, -128.0
    %v1059 = vmax.f32 %v1027, -128.0
    %v1060 = vmax.f32 %v1028, -128.0
    %v1061 = vmax.f32 %v1029, -128.0
    %v1062 = vmax.f32 %v1030, -128.0
    %v1063 = vmax.f32 %v1031, -128.0
    %v1064 = vmax.f32 %v1032, -128.0
    %v1065 = vmax.f32 %v1033, -128.0
    %v1066 = vmax.f32 %v1034, -128.0
    %v1067 = vmax.f32 %v1035, -128.0
    %v1068 = vmax.f32 %v1036, -128.0
    %v1069 = vmax.f32 %v1037, -128.0
    %v1070 = vmax.f32 %v1038, -128.0
    %v1071 = vmax.f32 %v1039, -128.0
    %v1072 = vmax.f32 %v1040, -128.0
    %v1073 = vmax.f32 %v1041, -128.0
    %v1074 = vmax.f32 %v1042, -128.0
    %v1075 = vmax.f32 %v1043, -128.0
    %v1076 = vmax.f32 %v1044, -128.0
    %v1077 = vmax.f32 %v1045, -128.0
    %v1078 = vmax.f32 %v1046, -128.0
    %v1079 = vmax.f32 %v1047, -128.0
    %v1080 = vmax.f32 %v1048, -128.0
    %v1081 = vmax.f32 %v1049, -128.0
    %v1082 = vmax.f32 %v1050, -128.0
    %v1083 = vmax.f32 %v1051, -128.0
    %v1084 = vmax.f32 %v1052, -128.0
    %v1085 = vmax.f32 %v1053, -128.0
    %v1086 = vmax.f32 %v1054, -128.0
    %v1087 = vmax.f32 %v1055, -128.0
    %v1088 = vmin.f32 %v1056, 127.0
    %v1089 = vmin.f32 %v1057, 127.0
    %v1090 = vmin.f32 %v1058, 127.0
    %v1091 = vmin.f32 %v1059, 127.0
    %v1092 = vmin.f32 %v1060, 127.0
    %v1093 = vmin.f32 %v1061, 127.0
    %v1094 = vmin.f32 %v1062, 127.0
    %v1095 = vmin.f32 %v1063, 127.0
    %v1096 = vmin.f32 %v1064, 127.0
    %v1097 = vmin.f32 %v1065, 127.0
    %v1098 = vmin.f32 %v1066, 127.0
    %v1099 = vmin.f32 %v1067, 127.0
    %v1100 = vmin.f32 %v1068, 127.0
    %v1101 = vmin.f32 %v1069, 127.0
    %v1102 = vmin.f32 %v1070, 127.0
    %v1103 = vmin.f32 %v1071, 127.0
    %v1104 = vmin.f32 %v1072, 127.0
    %v1105 = vmin.f32 %v1073, 127.0
    %v1106 = vmin.f32 %v1074, 127.0
    %v1107 = vmin.f32 %v1075, 127.0
    %v1108 = vmin.f32 %v1076, 127.0
    %v1109 = vmin.f32 %v1077, 127.0
    %v1110 = vmin.f32 %v1078, 127.0
    %v1111 = vmin.f32 %v1079, 127.0
    %v1112 = vmin.f32 %v1080, 127.0
    %v1113 = vmin.f32 %v1081, 127.0
    %v1114 = vmin.f32 %v1082, 127.0
    %v1115 = vmin.f32 %v1083, 127.0
    %v1116 = vmin.f32 %v1084, 127.0
    %v1117 = vmin.f32 %v1085, 127.0
    %v1118 = vmin.f32 %v1086, 127.0
    %v1119 = vmin.f32 %v1087, 127.0
    %v1120 = vcvt.f32.s32.to.zero.pseudo %v1088
    %v1121 = vcvt.f32.s32.to.zero.pseudo %v1089
    %v1122 = vcvt.f32.s32.to.zero.pseudo %v1090
    %v1123 = vcvt.f32.s32.to.zero.pseudo %v1091
    %v1124 = vcvt.f32.s32.to.zero.pseudo %v1092
    %v1125 = vcvt.f32.s32.to.zero.pseudo %v1093
    %v1126 = vcvt.f32.s32.to.zero.pseudo %v1094
    %v1127 = vcvt.f32.s32.to.zero.pseudo %v1095
    %v1128 = vcvt.f32.s32.to.zero.pseudo %v1096
    %v1129 = vcvt.f32.s32.to.zero.pseudo %v1097
    %v1130 = vcvt.f32.s32.to.zero.pseudo %v1098
    %v1131 = vcvt.f32.s32.to.zero.pseudo %v1099
    %v1132 = vcvt.f32.s32.to.zero.pseudo %v1100
    %v1133 = vcvt.f32.s32.to.zero.pseudo %v1101
    %v1134 = vcvt.f32.s32.to.zero.pseudo %v1102
    %v1135 = vcvt.f32.s32.to.zero.pseudo %v1103
    %v1136 = vcvt.f32.s32.to.zero.pseudo %v1104
    %v1137 = vcvt.f32.s32.to.zero.pseudo %v1105
    %v1138 = vcvt.f32.s32.to.zero.pseudo %v1106
    %v1139 = vcvt.f32.s32.to.zero.pseudo %v1107
    %v1140 = vcvt.f32.s32.to.zero.pseudo %v1108
    %v1141 = vcvt.f32.s32.to.zero.pseudo %v1109
    %v1142 = vcvt.f32.s32.to.zero.pseudo %v1110
    %v1143 = vcvt.f32.s32.to.zero.pseudo %v1111
    %v1144 = vcvt.f32.s32.to.zero.pseudo %v1112
    %v1145 = vcvt.f32.s32.to.zero.pseudo %v1113
    %v1146 = vcvt.f32.s32.to.zero.pseudo %v1114
    %v1147 = vcvt.f32.s32.to.zero.pseudo %v1115
    %v1148 = vcvt.f32.s32.to.zero.pseudo %v1116
    %v1149 = vcvt.f32.s32.to.zero.pseudo %v1117
    %v1150 = vcvt.f32.s32.to.zero.pseudo %v1118
    %v1151 = vcvt.f32.s32.to.zero.pseudo %v1119
    %v1152 = vpack.c.b16 %v1122, %v1120
    %v1153 = vpack.c.b16 %v1126, %v1124
    %v1154 = vpack.c.b8 %v1153, %v1152
    %v1155 = vpack.c.b16 %v1123, %v1121
    %v1156 = vpack.c.b16 %v1127, %v1125
    %v1157 = vpack.c.b8 %v1156, %v1155
    %v1158 = vpack.c.b16 %v1130, %v1128
    %v1159 = vpack.c.b16 %v1134, %v1132
    %v1160 = vpack.c.b8 %v1159, %v1158
    %v1161 = vpack.c.b16 %v1131, %v1129
    %v1162 = vpack.c.b16 %v1135, %v1133
    %v1163 = vpack.c.b8 %v1162, %v1161
    %v1164 = vpack.c.b16 %v1138, %v1136
    %v1165 = vpack.c.b16 %v1142, %v1140
    %v1166 = vpack.c.b8 %v1165, %v1164
    %v1167 = vpack.c.b16 %v1139, %v1137
    %v1168 = vpack.c.b16 %v1143, %v1141
    %v1169 = vpack.c.b8 %v1168, %v1167
    %v1170 = vpack.c.b16 %v1146, %v1144
    %v1171 = vpack.c.b16 %v1150, %v1148
    %v1172 = vpack.c.b8 %v1171, %v1170
    %v1173 = vpack.c.b16 %v1147, %v1145
    %v1174 = vpack.c.b16 %v1151, %v1149
    %v1175 = vpack.c.b8 %v1174, %v1173
    %v1176 = vmul.f32 %v672, 0.007874016
    %v1177 = vmul.f32 %v673, 0.007874016
    %v1178 = vmul.f32 %v674, 0.007874016
    %v1179 = vmul.f32 %v675, 0.007874016
    %v1180 = vmul.f32 %v676, 0.007874016
    %v1181 = vmul.f32 %v677, 0.007874016
    %v1182 = vmul.f32 %v678, 0.007874016
    %v1183 = vmul.f32 %v679, 0.007874016
    %v1184 = vmul.f32 %v680, 0.007874016
    %v1185 = vmul.f32 %v681, 0.007874016
    %v1186 = vmul.f32 %v682, 0.007874016
    %v1187 = vmul.f32 %v683, 0.007874016
    %v1188 = vmul.f32 %v684, 0.007874016
    %v1189 = vmul.f32 %v685, 0.007874016
    %v1190 = vmul.f32 %v686, 0.007874016
    %v1191 = vmul.f32 %v687, 0.007874016
    %1192 = vst [vmem:[#allocation8] sm:$0xff] %v1154
    %1193 = vst [vmem:[#allocation8 + $0x8] sm:$0xff] %v1157
    %1194 = vst [vmem:[#allocation8 + $0x10] sm:$0xff] %v1160
    %1195 = vst [vmem:[#allocation8 + $0x18] sm:$0xff] %v1163
    %1196 = vst [vmem:[#allocation8 + $0x20] sm:$0xff] %v1166
    %1197 = vst [vmem:[#allocation8 + $0x28] sm:$0xff] %v1169
    %1198 = vst [vmem:[#allocation8 + $0x30] sm:$0xff] %v1172
    %1199 = vst [vmem:[#allocation8 + $0x38] sm:$0xff] %v1175
    %vm1200 = vcmask 7168
    %1201 = vst.msk [vmem:[%s4] sm:$0xff] %vm1200, %v1176
    %1202 = vst.msk [vmem:[%s4 + $0x8] sm:$0xff] %vm1200, %v1177
    %1203 = vst.msk [vmem:[%s4 + $0x10] sm:$0xff] %vm1200, %v1178
    %1204 = vst.msk [vmem:[%s4 + $0x18] sm:$0xff] %vm1200, %v1179
    %1205 = vst.msk [vmem:[%s4 + $0x20] sm:$0xff] %vm1200, %v1180
    %1206 = vst.msk [vmem:[%s4 + $0x28] sm:$0xff] %vm1200, %v1181
    %1207 = vst.msk [vmem:[%s4 + $0x30] sm:$0xff] %vm1200, %v1182
    %1208 = vst.msk [vmem:[%s4 + $0x38] sm:$0xff] %vm1200, %v1183
    %1209 = vst.msk [vmem:[%s4 + $0x40] sm:$0xff] %vm1200, %v1184
    %1210 = vst.msk [vmem:[%s4 + $0x48] sm:$0xff] %vm1200, %v1185
    %1211 = vst.msk [vmem:[%s4 + $0x50] sm:$0xff] %vm1200, %v1186
    %1212 = vst.msk [vmem:[%s4 + $0x58] sm:$0xff] %vm1200, %v1187
    %1213 = vst.msk [vmem:[%s4 + $0x60] sm:$0xff] %vm1200, %v1188
    %1214 = vst.msk [vmem:[%s4 + $0x68] sm:$0xff] %vm1200, %v1189
    %1215 = vst.msk [vmem:[%s4 + $0x70] sm:$0xff] %vm1200, %v1190
    %1216 = vst.msk [vmem:[%s4 + $0x78] sm:$0xff] %vm1200, %v1191
    // Predicated region
    $region26: #{tpu_custom_call.1} parent=1 // pred_check
      _
    $region27: #{tpu_custom_call.1} parent=1 // pred_check_branch
      %1218 = sbr.rel (0) target = $region29
    $region28: #{tpu_custom_call.1} parent=1 // pred_region
      %1220 = vsyncadd [#allocation4], 0
      %s1221 = sshll.u32 [#allocation8], 4
      %s1222 = int_to_ptr.vmem [resolvable:$true] %s1221
      %s1223 = sshll.u32 %s3, 4
      %s1224 = int_to_ptr.hbm [resolvable:$true] %s1223
      %1229 = dma.vmem_to_hbm [thread:$0]  %s1222, 1024, %s1224, [#allocation4], 256, 256, 16
    $region29: #{tpu_custom_call.1} parent=1 // pred_fallthru
      _
    // Predicated region
    $region30: #{tpu_custom_call.1} parent=1 // pred_check
      _
    $region31: #{tpu_custom_call.1} parent=1 // pred_check_branch
      %1231 = sbr.rel (0) target = $region33
    $region32: #{tpu_custom_call.1} parent=1 // pred_region
      _
    $region33: #{tpu_custom_call.1} parent=1 // pred_fallthru
      _
    // Predicated region
    $region34: #{tpu_custom_call.1} parent=1 // pred_check
      _
    $region35: #{tpu_custom_call.1} parent=1 // pred_check_branch
      %1233 = sbr.rel (0) target = $region37
    $region36: #{tpu_custom_call.1} parent=1 // pred_region
      %1235 = dma.done [#allocation4], 1024
    $region37: #{tpu_custom_call.1} parent=1 // pred_fallthru
      _
    // Predicated region
    $region38: #{tpu_custom_call.1} parent=1 // pred_check
      _
    $region39: #{tpu_custom_call.1} parent=1 // pred_check_branch
      %1237 = sbr.rel (0) target = $region41
    $region40: #{tpu_custom_call.1} parent=1 // pred_region
      _
    $region41: #{tpu_custom_call.1} parent=1 // pred_fallthru
      _
    %1238 = vsyncpa [#allocation3], 1
    %1239 = vsyncpa [#allocation6], 1
    %1240 = vsyncpa [#allocation4], 1

</llo_original>
